<compile_context>
chip_gen: v5e
topology: v5e:2x2
jax: 0.10.0
libtpu: 0.0.40
codegen_flags: <defaults>
</compile_context>

<pallas_src>
import functools

import jax
import jax.numpy as jnp
from jax import lax
from jax.experimental import pallas as pl
from jax.experimental.pallas import tpu as pltpu

_ONE_F32_BITS = 0x3F800000   # bit pattern of float32 1.0
_SELECT_FANOUT = 16          # 16-ary bracketing for the rare rank-k path


# ---------------------------------------------------------------------------
# Main per-pixel kernel: CE loss, target-class prob, per-tile partial reductions
# ---------------------------------------------------------------------------
def _ohem_pixel_kernel(score_ref, target_ref, loss_ref, prob_ref, stats_ref, *,
                       ignore_label, thres, hw, needs_tail_mask):
    """One (C, TP) tile of logits -> per-pixel loss/prob + per-tile reductions.

    score_ref : (C, TP) logits (bf16 or f32; upcast to f32 in-kernel)
    target_ref: (1, TP) int32 labels
    loss_ref  : (1, TP) f32 — CE loss (0.0 at ignored / padded pixels)
    prob_ref  : (1, TP) f32 — softmax prob of target class (+inf at ignored / padded pixels)
    stats_ref : (8, 128) f32 — row 0: #valid, row 1: #(prob<=thres), row 2: #(prob<thres),
                               row 3: sum(loss | prob<thres), rows 4..7: 0
    """
    s = score_ref[...].astype(jnp.float32)                     # (C, TP)
    t = target_ref[...]                                        # (1, TP)
    c, tp = s.shape

    valid = t != ignore_label
    if needs_tail_mask:
        # Last tile may run past H*W; those lanes hold stale VMEM -> treat as ignored.
        col = pl.program_id(1) * tp + lax.broadcasted_iota(jnp.int32, (1, tp), 1)
        valid = jnp.logical_and(valid, col < hw)
    tt = jnp.where(valid, t, 0)                                # ignore -> class 0 (tmp_target)

    # Softmax statistics over the class (sublane) axis; single exp pass over (C, TP).
    m = jnp.max(s, axis=0, keepdims=True)                      # (1, TP)
    z = jnp.sum(jnp.exp(s - m), axis=0, keepdims=True)         # (1, TP), >= 1
    class_ids = lax.broadcasted_iota(jnp.int32, (c, tp), 0)
    s_t = jnp.sum(jnp.where(class_ids == tt, s, 0.0), axis=0, keepdims=True)

    nll = jnp.log(z) + (m - s_t)                               # cross-entropy, no class weights
    prob = jnp.exp(s_t - m) / z                                # target-class prob, <= 1.0

    loss_m = jnp.where(valid, nll, 0.0)
    prob_m = jnp.where(valid, prob, jnp.float32(jnp.inf))
    loss_ref[...] = loss_m                                     # single full-block stores
    prob_ref[...] = prob_m

    # Per-tile partial reductions -> the common path never re-reads HBM after the kernel.
    thres_f = jnp.float32(thres)
    keep = prob_m < thres_f                                    # +inf never kept
    cnt_valid = jnp.sum(valid.astype(jnp.float32), axis=1, keepdims=True)          # (1, 1)
    cnt_le = jnp.sum((prob_m <= thres_f).astype(jnp.float32), axis=1, keepdims=True)
    cnt_lt = jnp.sum(keep.astype(jnp.float32), axis=1, keepdims=True)
    loss_kept = jnp.sum(jnp.where(keep, loss_m, 0.0), axis=1, keepdims=True)

    row = lax.broadcasted_iota(jnp.int32, (8, 128), 0)
    stats_ref[...] = jnp.where(row == 0, cnt_valid,
                     jnp.where(row == 1, cnt_le,
                     jnp.where(row == 2, cnt_lt,
                     jnp.where(row == 3, loss_kept, jnp.float32(0.0)))))


def _ohem_pixel_stats(score, target, *, ignore_label, thres, tile_p, cast_bf16):
    """score: (N, C, H, W), target: (N, H, W) -> (loss, prob, per-tile stats)."""
    n, c, h, w = score.shape
    hw = h * w

    score3 = score.reshape(n, c, hw)                   # free reshape (NCHW is contiguous)
    if cast_bf16:
        # Halves the dominant HBM read; intended to fuse with the producing layer.
        score3 = score3.astype(jnp.bfloat16)
    target3 = target.reshape(n, 1, hw).astype(jnp.int32)

    hw_lane = pl.cdiv(hw, 128) * 128
    tile = max(128, (min(int(tile_p), hw_lane) // 128) * 128)
    num_tiles = pl.cdiv(hw, tile)
    hw_pad = num_tiles * tile                          # only the small f32 outputs are padded

    kernel = functools.partial(_ohem_pixel_kernel, ignore_label=ignore_label,
                               thres=float(thres), hw=hw,
                               needs_tail_mask=(hw_pad != hw))

    loss, prob, stats = pl.pallas_call(
        kernel,
        out_shape=(
            jax.ShapeDtypeStruct((n, 1, hw_pad), jnp.float32),
            jax.ShapeDtypeStruct((n, 1, hw_pad), jnp.float32),
            jax.ShapeDtypeStruct((n * num_tiles, 8, 128), jnp.float32),
        ),
        grid_spec=pltpu.PrefetchScalarGridSpec(
            num_scalar_prefetch=0,
            grid=(n, num_tiles),
            in_specs=[
                pl.BlockSpec((None, c, tile), lambda b, i: (b, 0, i)),
                pl.BlockSpec((None, 1, tile), lambda b, i: (b, 0, i)),
            ],
            out_specs=[
                pl.BlockSpec((None, 1, tile), lambda b, i: (b, 0, i)),
                pl.BlockSpec((None, 1, tile), lambda b, i: (b, 0, i)),
                pl.BlockSpec((None, 8, 128), lambda b, i: (b * num_tiles + i, 0, 0)),
            ],
        ),
        compiler_params=pltpu.CompilerParams(
            dimension_semantics=("parallel", "parallel"),
            vmem_limit_bytes=48 * 1024 * 1024,   # big tiles + intermediates; < v7x physical
        ),
    )(score3, target3)
    return loss, prob, stats


# ---------------------------------------------------------------------------
# Rare rank-k path: exact (k+1)-th smallest valid prob via 16-ary bit bracketing
# ---------------------------------------------------------------------------
def _count_le_kernel(piv_ref, prob_ref, cnt_ref, *, n_piv):
    """Per-lane counts of (prob <= pivot_j) for n_piv pivots in a single pass.

    piv_ref : SMEM (n_piv,) int32 — pivot f32 bit patterns (monotone for prob >= 0)
    prob_ref: VMEM (R, 128) f32 block of prob (pixel order irrelevant for counting)
    cnt_ref : VMEM (16, 128) f32 — row j = per-lane counts for pivot j (exact, <= R < 2^24)
    """
    pb = pltpu.bitcast(prob_ref[...], jnp.int32)       # +inf sorts above every pivot <= 1.0
    row = lax.broadcasted_iota(jnp.int32, (_SELECT_FANOUT, 128), 0)
    acc = jnp.zeros((_SELECT_FANOUT, 128), jnp.float32)
    for j in range(n_piv):                             # static unroll, n_piv == 15
        lane_cnt = jnp.sum((pb <= piv_ref[j]).astype(jnp.float32), axis=0, keepdims=True)
        acc = jnp.where(row == j, lane_cnt, acc)
    cnt_ref[...] = acc


def _count_le_pivots(prob, piv_bits):
    """One fused Pallas pass over prob; returns int32 counts for each pivot bit pattern."""
    n, _, hw_pad = prob.shape
    total_rows = (n * hw_pad) // 128
    prob2 = prob.reshape(total_rows, 128)              # contiguous split -> no data movement

    rows_pb = total_rows
    for cand in (1024, 512, 256, 128, 64, 32, 16, 8):  # block rows: divisor of total_rows
        if total_rows % cand == 0:
            rows_pb = cand
            break
    num_blocks = total_rows // rows_pb
    n_piv = piv_bits.shape[0]

    cnt = pl.pallas_call(
        functools.partial(_count_le_kernel, n_piv=n_piv),
        out_shape=jax.ShapeDtypeStruct((num_blocks, _SELECT_FANOUT, 128), jnp.float32),
        grid_spec=pltpu.PrefetchScalarGridSpec(
            num_scalar_prefetch=1,
            grid=(num_blocks,),
            in_specs=[pl.BlockSpec((rows_pb, 128), lambda i, piv: (i, 0))],
            out_specs=pl.BlockSpec((None, _SELECT_FANOUT, 128), lambda i, piv: (i, 0, 0)),
        ),
        compiler_params=pltpu.CompilerParams(dimension_semantics=("parallel",)),
    )(piv_bits, prob2)
    return jnp.sum(cnt.astype(jnp.int32), axis=(0, 2))[:n_piv]     # exact (n_piv,) counts


def _kth_smallest_prob(prob, k, thres):
    """Exact (k+1)-th smallest valid prob (0-indexed rank k), given it is > thres.

    16-ary bracketing on the f32 bit pattern: ~ceil(log16(2^30)) ~= 8 passes of 4 B/pixel
    (one fused multi-pivot count per pass) instead of 31 sequential full reductions.
    """
    kp1 = k + 1
    jvec = jnp.arange(1, _SELECT_FANOUT, dtype=jnp.int32)          # (15,)
    lo0 = jnp.maximum(lax.bitcast_convert_type(jnp.float32(thres), jnp.int32) + 1,
                      jnp.int32(0))                                # rank-k value is > thres
    hi0 = jnp.int32(_ONE_F32_BITS)                                 # probs are <= 1.0
    lo0 = jnp.minimum(lo0, hi0)

    def cond(state):
        lo, hi = state
        return lo < hi

    def body(state):
        lo, hi = state
        span = hi - lo
        # exact floor(span * j / fanout), no int32 overflow
        piv = lo + (span // _SELECT_FANOUT) * jvec + ((span % _SELECT_FANOUT) * jvec) // _SELECT_FANOUT
        cnt = _count_le_pivots(prob, piv)                          # (15,) int32
        idx = jnp.sum((cnt < kp1).astype(jnp.int32))               # first pivot with cnt >= kp1
        lo_cand = jnp.concatenate([lo[None], piv + 1])
        hi_cand = jnp.concatenate([piv, hi[None]])
        return lo_cand[idx], hi_cand[idx]

    lo, _ = lax.while_loop(cond, body, (lo0, hi0))
    return lax.bitcast_convert_type(lo, jnp.float32)


# ---------------------------------------------------------------------------
# Public entry point
# ---------------------------------------------------------------------------
def ohem_cross_entropy(score, target, *, ignore_label=-1, thres=0.7, min_kept=100000,
                       balance_weight=1.0, tile_p=32768, cast_bf16=True):
    """Forward pass of OhemCrossEntropy (single output head, no class weights).

    ignore_label / thres / min_kept must be static Python numbers (as in the torch module).
    Returns NaN when nothing is kept (mean of an empty set), matching torch semantics.
    """
    min_kept = max(1, int(min_kept))
    loss, prob, stats = _ohem_pixel_stats(score, target, ignore_label=ignore_label,
                                          thres=thres, tile_p=tile_p, cast_bf16=cast_bf16)

    # Tiny per-tile stats array: integer counts are exact (per-tile <= tile < 2^24).
    num_valid = jnp.sum(stats[:, 0, 0].astype(jnp.int32))
    n_le_thres = jnp.sum(stats[:, 1, 0].astype(jnp.int32))
    cnt_lt = jnp.sum(stats[:, 2, 0])
    loss_sum_lt = jnp.sum(stats[:, 3, 0])

    k = jnp.minimum(jnp.int32(min_kept), num_valid - 1)   # pred[min(min_kept, numel - 1)]

    def common_case():
        # k-th smallest prob <= thres  =>  threshold == thres; masked mean comes straight
        # from the fused per-tile reductions (single HBM pass end-to-end).
        return loss_sum_lt / cnt_lt

    def rare_case():
        # threshold == (k+1)-th smallest valid prob (> thres): exact rank selection, then one
        # fused re-read of (loss, prob) for the masked mean.  Padded lanes (prob=+inf,
        # loss=0) are neutral, so no slicing of the padded arrays is needed.
        threshold = _kth_smallest_prob(prob, k, float(thres))
        kept = prob < threshold
        return jnp.sum(jnp.where(kept, loss, 0.0)) / jnp.sum(kept.astype(jnp.float32))

    mean_loss = lax.cond(n_le_thres >= k + 1, common_case, rare_case)
    return jnp.float32(balance_weight) * mean_loss


# ---------------------------------------------------------------------------
# Pure-JAX sort-based reference (mirrors the PyTorch module; sanity check only)
# ---------------------------------------------------------------------------
def _ohem_reference(score, target, *, ignore_label=-1, thres=0.7, min_kept=100000,
                    balance_weight=1.0):
    n, c, h, w = score.shape
    logits = jnp.transpose(score, (0, 2, 3, 1)).reshape(-1, c).astype(jnp.float32)
    t = target.reshape(-1)
    valid = t != ignore_label
    tt = jnp.where(valid, t, 0).astype(jnp.int32)
    lse = jax.scipy.special.logsumexp(logits, axis=-1)
    s_t = jnp.take_along_axis(logits, tt[:, None], axis=-1)[:, 0]
    loss = jnp.where(valid, lse - s_t, 0.0)
    prob = jnp.where(valid, jnp.exp(s_t - lse), jnp.inf)
    sorted_prob = jnp.sort(prob)
    k = jnp.minimum(jnp.int32(max(1, min_kept)), jnp.sum(valid) - 1)
    threshold = jnp.maximum(jnp.take(sorted_prob, k), jnp.float32(thres))
    kept = (prob < threshold).astype(jnp.float32)
    return jnp.float32(balance_weight) * jnp.sum(loss * kept) / jnp.sum(kept)


if __name__ == "__main__":
    # Small deterministic example: batch=2, 19 classes, 16x18 spatial (288 px: not a multiple
    # of 128, so tail masking and partial boundary blocks are exercised).
    N, C, H, W = 2, 19, 16, 18
    IGNORE = -1

    key = jax.random.PRNGKey(0)
    k_score, k_tgt, k_ign = jax.random.split(key, 3)

    score = jax.random.normal(k_score, (N, C, H, W), dtype=jnp.float32) * 2.0
    target = jax.random.randint(k_tgt, (N, H, W), 0, C, dtype=jnp.int32)
    ignore_mask = jax.random.bernoulli(k_ign, 0.05, (N, H, W))      # ~5% ignored pixels
    target = jnp.where(ignore_mask, jnp.int32(IGNORE), target)

    cases = [
        # (cfg,                          cast_bf16, tile_p, tolerance)
        (dict(thres=0.7, min_kept=200), False, 32768, 1e-4),  # common path, single tile
        (dict(thres=0.7, min_kept=200), False, 128,   1e-4),  # common path, multi-tile + tail
        (dict(thres=0.0, min_kept=300), False, 128,   1e-4),  # rank-k path (selection kernel)
        (dict(thres=0.7, min_kept=200), True,  32768, 5e-3),  # bf16 logits, common path
        (dict(thres=0.0, min_kept=300), True,  32768, 5e-3),  # bf16 logits, rank-k path
    ]
    for cfg, bf16, tile_p, tol in cases:
        fn = jax.jit(functools.partial(ohem_cross_entropy, ignore_label=IGNORE,
                                       balance_weight=1.0, tile_p=tile_p,
                                       cast_bf16=bf16, **cfg))
        out = jax.block_until_ready(fn(score, target))
        ref_score = score.astype(jnp.bfloat16).astype(jnp.float32) if bf16 else score
        ref = jax.block_until_ready(
            _ohem_reference(ref_score, target, ignore_label=IGNORE, balance_weight=1.0, **cfg))
        assert jnp.isfinite(out), f"non-finite loss for {cfg} (bf16={bf16}): {out}"
        assert jnp.allclose(out, ref, rtol=tol, atol=tol), \
            f"mismatch for {cfg} (bf16={bf16}, tile={tile_p}): {out} vs {ref}"

    print("KERNEL_OK")
</pallas_src>

<mosaic_0001>
module attributes {stable_mosaic.version = 11 : i64} {
  func.func @_ohem_pixel_kernel(%arg0: i32, %arg1: i32, %arg2: memref<1x19x384xf32, #tpu.memory_space<vmem>>, %arg3: memref<1x1x384xi32, #tpu.memory_space<vmem>>, %arg4: memref<1x1x384xf32, #tpu.memory_space<vmem>>, %arg5: memref<1x1x384xf32, #tpu.memory_space<vmem>>, %arg6: memref<1x8x128xf32, #tpu.memory_space<vmem>>) attributes {dimension_semantics = [#tpu.dimension_semantics<parallel>, #tpu.dimension_semantics<parallel>], iteration_bounds = array<i64: 2, 1>, scalar_prefetch = 0 : i64, scratch_operands = 0 : i64, tpu.core_type = #tpu.core_type<tc>, window_params = [{transform_indices = @transform_0, window_bounds = array<i64: 1, 19, 384>}, {transform_indices = @transform_1, window_bounds = array<i64: 1, 1, 384>}, {transform_indices = @transform_2, window_bounds = array<i64: 1, 1, 384>}, {transform_indices = @transform_3, window_bounds = array<i64: 1, 1, 384>}, {transform_indices = @transform_4, window_bounds = array<i64: 1, 8, 128>}]} {
    %c0 = arith.constant 0 : index
    %c0_0 = arith.constant 0 : index
    %c0_1 = arith.constant 0 : index
    %0 = vector.load %arg2[%c0, %c0_0, %c0_1] : memref<1x19x384xf32, #tpu.memory_space<vmem>>, vector<1x19x384xf32>
    %1 = vector.shape_cast %0 : vector<1x19x384xf32> to vector<19x384xf32>
    %c0_2 = arith.constant 0 : index
    %c0_3 = arith.constant 0 : index
    %c0_4 = arith.constant 0 : index
    %2 = vector.load %arg3[%c0_2, %c0_3, %c0_4] : memref<1x1x384xi32, #tpu.memory_space<vmem>>, vector<1x1x384xi32>
    %3 = vector.shape_cast %2 : vector<1x1x384xi32> to vector<1x384xi32>
    %c-1_i32 = arith.constant -1 : i32
    %4 = vector.broadcast %c-1_i32 : i32 to vector<1x384xi32>
    %5 = arith.cmpi ne, %3, %4 : vector<1x384xi32>
    %c384_i32 = arith.constant 384 : i32
    %6 = arith.muli %arg1, %c384_i32 : i32
    %7 = tpu.iota {dimensions = array<i32: 1>} : vector<1x384xi32>
    %8 = vector.broadcast %6 : i32 to vector<1x384xi32>
    %9 = arith.addi %8, %7 : vector<1x384xi32>
    %c288_i32 = arith.constant 288 : i32
    %10 = vector.broadcast %c288_i32 : i32 to vector<1x384xi32>
    %11 = arith.cmpi slt, %9, %10 : vector<1x384xi32>
    %12 = arith.andi %5, %11 : vector<1x384xi1>
    %c0_i32 = arith.constant 0 : i32
    %13 = vector.broadcast %c0_i32 : i32 to vector<1x384xi32>
    %14 = arith.select %12, %3, %13 : vector<1x384xi1>, vector<1x384xi32>
    %cst = arith.constant dense<0xFF800000> : vector<384xf32>
    %15 = vector.multi_reduction <maximumf>, %1, %cst [0] : vector<19x384xf32> to vector<384xf32>
    %16 = vector.shape_cast %15 : vector<384xf32> to vector<1x384xf32>
    %17 = vector.broadcast %16 : vector<1x384xf32> to vector<19x384xf32>
    %18 = arith.subf %1, %17 : vector<19x384xf32>
    %19 = math.exp %18 : vector<19x384xf32>
    %cst_5 = arith.constant dense<0.000000e+00> : vector<384xf32>
    %20 = vector.multi_reduction <add>, %19, %cst_5 [0] : vector<19x384xf32> to vector<384xf32>
    %21 = vector.shape_cast %20 : vector<384xf32> to vector<1x384xf32>
    %22 = tpu.iota {dimensions = array<i32: 0>} : vector<19x384xi32>
    %23 = vector.broadcast %14 : vector<1x384xi32> to vector<19x384xi32>
    %24 = arith.cmpi eq, %22, %23 : vector<19x384xi32>
    %cst_6 = arith.constant 0.000000e+00 : f32
    %25 = vector.broadcast %cst_6 : f32 to vector<19x384xf32>
    %26 = arith.select %24, %1, %25 : vector<19x384xi1>, vector<19x384xf32>
    %cst_7 = arith.constant dense<0.000000e+00> : vector<384xf32>
    %27 = vector.multi_reduction <add>, %26, %cst_7 [0] : vector<19x384xf32> to vector<384xf32>
    %28 = vector.shape_cast %27 : vector<384xf32> to vector<1x384xf32>
    %29 = math.log %21 : vector<1x384xf32>
    %30 = arith.subf %16, %28 : vector<1x384xf32>
    %31 = arith.addf %29, %30 : vector<1x384xf32>
    %32 = arith.subf %28, %16 : vector<1x384xf32>
    %33 = math.exp %32 : vector<1x384xf32>
    %34 = arith.divf %33, %21 : vector<1x384xf32>
    %cst_8 = arith.constant 0.000000e+00 : f32
    %35 = vector.broadcast %cst_8 : f32 to vector<1x384xf32>
    %36 = arith.select %12, %31, %35 : vector<1x384xi1>, vector<1x384xf32>
    %cst_9 = arith.constant 0x7F800000 : f32
    %37 = vector.broadcast %cst_9 : f32 to vector<1x384xf32>
    %38 = arith.select %12, %34, %37 : vector<1x384xi1>, vector<1x384xf32>
    %c0_10 = arith.constant 0 : index
    %c0_11 = arith.constant 0 : index
    %c0_12 = arith.constant 0 : index
    %39 = vector.load %arg4[%c0_10, %c0_11, %c0_12] : memref<1x1x384xf32, #tpu.memory_space<vmem>>, vector<1x1x384xf32>
    %40 = vector.shape_cast %39 : vector<1x1x384xf32> to vector<1x384xf32>
    %41 = vector.shape_cast %36 : vector<1x384xf32> to vector<1x1x384xf32>
    tpu.vector_store %arg4[%c0_10, %c0_11, %c0_12], %41 {strides = array<i32>} : memref<1x1x384xf32, #tpu.memory_space<vmem>>, vector<1x1x384xf32>,
    %c0_13 = arith.constant 0 : index
    %c0_14 = arith.constant 0 : index
    %c0_15 = arith.constant 0 : index
    %42 = vector.load %arg5[%c0_13, %c0_14, %c0_15] : memref<1x1x384xf32, #tpu.memory_space<vmem>>, vector<1x1x384xf32>
    %43 = vector.shape_cast %42 : vector<1x1x384xf32> to vector<1x384xf32>
    %44 = vector.shape_cast %38 : vector<1x384xf32> to vector<1x1x384xf32>
    tpu.vector_store %arg5[%c0_13, %c0_14, %c0_15], %44 {strides = array<i32>} : memref<1x1x384xf32, #tpu.memory_space<vmem>>, vector<1x1x384xf32>,
    %cst_16 = arith.constant 0.699999988 : f32
    %45 = vector.broadcast %cst_16 : f32 to vector<1x384xf32>
    %46 = arith.cmpf olt, %38, %45 : vector<1x384xf32>
    %47 = arith.extui %12 : vector<1x384xi1> to vector<1x384xi32>
    %48 = arith.sitofp %47 : vector<1x384xi32> to vector<1x384xf32>
    %cst_17 = arith.constant dense<0.000000e+00> : vector<1xf32>
    %49 = vector.multi_reduction <add>, %48, %cst_17 [1] : vector<1x384xf32> to vector<1xf32>
    %50 = vector.shape_cast %49 : vector<1xf32> to vector<1x1xf32>
    %cst_18 = arith.constant 0.699999988 : f32
    %51 = vector.broadcast %cst_18 : f32 to vector<1x384xf32>
    %52 = arith.cmpf ole, %38, %51 : vector<1x384xf32>
    %53 = arith.extui %52 : vector<1x384xi1> to vector<1x384xi32>
    %54 = arith.sitofp %53 : vector<1x384xi32> to vector<1x384xf32>
    %cst_19 = arith.constant dense<0.000000e+00> : vector<1xf32>
    %55 = vector.multi_reduction <add>, %54, %cst_19 [1] : vector<1x384xf32> to vector<1xf32>
    %56 = vector.shape_cast %55 : vector<1xf32> to vector<1x1xf32>
    %57 = arith.extui %46 : vector<1x384xi1> to vector<1x384xi32>
    %58 = arith.sitofp %57 : vector<1x384xi32> to vector<1x384xf32>
    %cst_20 = arith.constant dense<0.000000e+00> : vector<1xf32>
    %59 = vector.multi_reduction <add>, %58, %cst_20 [1] : vector<1x384xf32> to vector<1xf32>
    %60 = vector.shape_cast %59 : vector<1xf32> to vector<1x1xf32>
    %cst_21 = arith.constant 0.000000e+00 : f32
    %61 = vector.broadcast %cst_21 : f32 to vector<1x384xf32>
    %62 = arith.select %46, %36, %61 : vector<1x384xi1>, vector<1x384xf32>
    %cst_22 = arith.constant dense<0.000000e+00> : vector<1xf32>
    %63 = vector.multi_reduction <add>, %62, %cst_22 [1] : vector<1x384xf32> to vector<1xf32>
    %64 = vector.shape_cast %63 : vector<1xf32> to vector<1x1xf32>
    %65 = tpu.iota {dimensions = array<i32: 0>} : vector<8x128xi32>
    %c0_i32_23 = arith.constant 0 : i32
    %66 = vector.broadcast %c0_i32_23 : i32 to vector<8x128xi32>
    %67 = arith.cmpi eq, %65, %66 : vector<8x128xi32>
    %c1_i32 = arith.constant 1 : i32
    %68 = vector.broadcast %c1_i32 : i32 to vector<8x128xi32>
    %69 = arith.cmpi eq, %65, %68 : vector<8x128xi32>
    %c2_i32 = arith.constant 2 : i32
    %70 = vector.broadcast %c2_i32 : i32 to vector<8x128xi32>
    %71 = arith.cmpi eq, %65, %70 : vector<8x128xi32>
    %c3_i32 = arith.constant 3 : i32
    %72 = vector.broadcast %c3_i32 : i32 to vector<8x128xi32>
    %73 = arith.cmpi eq, %65, %72 : vector<8x128xi32>
    %cst_24 = arith.constant 0.000000e+00 : f32
    %74 = vector.shape_cast %64 : vector<1x1xf32> to vector<1x1xf32>
    %75 = vector.broadcast %74 : vector<1x1xf32> to vector<8x128xf32>
    %76 = vector.broadcast %cst_24 : f32 to vector<8x128xf32>
    %77 = arith.select %73, %75, %76 : vector<8x128xi1>, vector<8x128xf32>
    %78 = vector.shape_cast %60 : vector<1x1xf32> to vector<1x1xf32>
    %79 = vector.broadcast %78 : vector<1x1xf32> to vector<8x128xf32>
    %80 = arith.select %71, %79, %77 : vector<8x128xi1>, vector<8x128xf32>
    %81 = vector.shape_cast %56 : vector<1x1xf32> to vector<1x1xf32>
    %82 = vector.broadcast %81 : vector<1x1xf32> to vector<8x128xf32>
    %83 = arith.select %69, %82, %80 : vector<8x128xi1>, vector<8x128xf32>
    %84 = vector.shape_cast %50 : vector<1x1xf32> to vector<1x1xf32>
    %85 = vector.broadcast %84 : vector<1x1xf32> to vector<8x128xf32>
    %86 = arith.select %67, %85, %83 : vector<8x128xi1>, vector<8x128xf32>
    %c0_25 = arith.constant 0 : index
    %c0_26 = arith.constant 0 : index
    %c0_27 = arith.constant 0 : index
    %87 = vector.load %arg6[%c0_25, %c0_26, %c0_27] : memref<1x8x128xf32, #tpu.memory_space<vmem>>, vector<1x8x128xf32>
    %88 = vector.shape_cast %87 : vector<1x8x128xf32> to vector<8x128xf32>
    %89 = vector.shape_cast %86 : vector<8x128xf32> to vector<1x8x128xf32>
    tpu.vector_store %arg6[%c0_25, %c0_26, %c0_27], %89 {strides = array<i32>} : memref<1x8x128xf32, #tpu.memory_space<vmem>>, vector<1x8x128xf32>,
    return
  }
  func.func @transform_0(%arg0: i32, %arg1: i32) -> (i32, i32, i32) {
    %c0_i32 = arith.constant 0 : i32
    %c0_i32_0 = arith.constant 0 : i32
    return %arg0, %c0_i32, %arg1 : i32, i32, i32
  }
  func.func @transform_1(%arg0: i32, %arg1: i32) -> (i32, i32, i32) {
    %c0_i32 = arith.constant 0 : i32
    %c0_i32_0 = arith.constant 0 : i32
    return %arg0, %c0_i32, %arg1 : i32, i32, i32
  }
  func.func @transform_2(%arg0: i32, %arg1: i32) -> (i32, i32, i32) {
    %c0_i32 = arith.constant 0 : i32
    %c0_i32_0 = arith.constant 0 : i32
    return %arg0, %c0_i32, %arg1 : i32, i32, i32
  }
  func.func @transform_3(%arg0: i32, %arg1: i32) -> (i32, i32, i32) {
    %c0_i32 = arith.constant 0 : i32
    %c0_i32_0 = arith.constant 0 : i32
    return %arg0, %c0_i32, %arg1 : i32, i32, i32
  }
  func.func @transform_4(%arg0: i32, %arg1: i32) -> (i32, i32, i32) {
    %c1_i32 = arith.constant 1 : i32
    %0 = arith.muli %arg0, %c1_i32 : i32
    %1 = arith.addi %0, %arg1 : i32
    %c0_i32 = arith.constant 0 : i32
    %c0_i32_0 = arith.constant 0 : i32
    %c0_i32_1 = arith.constant 0 : i32
    return %1, %c0_i32, %c0_i32_0 : i32, i32, i32
  }
}

module attributes {stable_mosaic.version = 11 : i64} {
  func.func @_count_le_kernel(%arg0: i32, %arg1: memref<15xi32, #tpu.memory_space<smem>>, %arg2: memref<6x128xf32, #tpu.memory_space<vmem>>, %arg3: memref<1x16x128xf32, #tpu.memory_space<vmem>>) attributes {dimension_semantics = [#tpu.dimension_semantics<parallel>], iteration_bounds = array<i64: 1>, scalar_prefetch = 1 : i64, scratch_operands = 0 : i64, tpu.core_type = #tpu.core_type<tc>, window_params = [{transform_indices = @transform_0, window_bounds = array<i64: 6, 128>}, {transform_indices = @transform_1, window_bounds = array<i64: 1, 16, 128>}]} {
    %c0 = arith.constant 0 : index
    %c0_0 = arith.constant 0 : index
    %0 = vector.load %arg2[%c0, %c0_0] : memref<6x128xf32, #tpu.memory_space<vmem>>, vector<6x128xf32>
    %1 = tpu.bitcast %0 : vector<6x128xf32> -> vector<6x128xi32>
    %2 = tpu.iota {dimensions = array<i32: 0>} : vector<16x128xi32>
    %cst = arith.constant 0.000000e+00 : f32
    %3 = vector.broadcast %cst : f32 to vector<16x128xf32>
    %c0_1 = arith.constant 0 : index
    %4 = memref.load %arg1[%c0_1] : memref<15xi32, #tpu.memory_space<smem>>
    %5 = vector.broadcast %4 : i32 to vector<6x128xi32>
    %6 = arith.cmpi sle, %1, %5 : vector<6x128xi32>
    %7 = arith.extui %6 : vector<6x128xi1> to vector<6x128xi32>
    %8 = arith.sitofp %7 : vector<6x128xi32> to vector<6x128xf32>
    %cst_2 = arith.constant dense<0.000000e+00> : vector<128xf32>
    %9 = vector.multi_reduction <add>, %8, %cst_2 [0] : vector<6x128xf32> to vector<128xf32>
    %10 = vector.shape_cast %9 : vector<128xf32> to vector<1x128xf32>
    %c0_i32 = arith.constant 0 : i32
    %11 = vector.broadcast %c0_i32 : i32 to vector<16x128xi32>
    %12 = arith.cmpi eq, %2, %11 : vector<16x128xi32>
    %13 = vector.shape_cast %10 : vector<1x128xf32> to vector<1x128xf32>
    %14 = vector.broadcast %13 : vector<1x128xf32> to vector<16x128xf32>
    %15 = arith.select %12, %14, %3 : vector<16x128xi1>, vector<16x128xf32>
    %c1 = arith.constant 1 : index
    %16 = memref.load %arg1[%c1] : memref<15xi32, #tpu.memory_space<smem>>
    %17 = vector.broadcast %16 : i32 to vector<6x128xi32>
    %18 = arith.cmpi sle, %1, %17 : vector<6x128xi32>
    %19 = arith.extui %18 : vector<6x128xi1> to vector<6x128xi32>
    %20 = arith.sitofp %19 : vector<6x128xi32> to vector<6x128xf32>
    %cst_3 = arith.constant dense<0.000000e+00> : vector<128xf32>
    %21 = vector.multi_reduction <add>, %20, %cst_3 [0] : vector<6x128xf32> to vector<128xf32>
    %22 = vector.shape_cast %21 : vector<128xf32> to vector<1x128xf32>
    %c1_i32 = arith.constant 1 : i32
    %23 = vector.broadcast %c1_i32 : i32 to vector<16x128xi32>
    %24 = arith.cmpi eq, %2, %23 : vector<16x128xi32>
    %25 = vector.shape_cast %22 : vector<1x128xf32> to vector<1x128xf32>
    %26 = vector.broadcast %25 : vector<1x128xf32> to vector<16x128xf32>
    %27 = arith.select %24, %26, %15 : vector<16x128xi1>, vector<16x128xf32>
    %c2 = arith.constant 2 : index
    %28 = memref.load %arg1[%c2] : memref<15xi32, #tpu.memory_space<smem>>
    %29 = vector.broadcast %28 : i32 to vector<6x128xi32>
    %30 = arith.cmpi sle, %1, %29 : vector<6x128xi32>
    %31 = arith.extui %30 : vector<6x128xi1> to vector<6x128xi32>
    %32 = arith.sitofp %31 : vector<6x128xi32> to vector<6x128xf32>
    %cst_4 = arith.constant dense<0.000000e+00> : vector<128xf32>
    %33 = vector.multi_reduction <add>, %32, %cst_4 [0] : vector<6x128xf32> to vector<128xf32>
    %34 = vector.shape_cast %33 : vector<128xf32> to vector<1x128xf32>
    %c2_i32 = arith.constant 2 : i32
    %35 = vector.broadcast %c2_i32 : i32 to vector<16x128xi32>
    %36 = arith.cmpi eq, %2, %35 : vector<16x128xi32>
    %37 = vector.shape_cast %34 : vector<1x128xf32> to vector<1x128xf32>
    %38 = vector.broadcast %37 : vector<1x128xf32> to vector<16x128xf32>
    %39 = arith.select %36, %38, %27 : vector<16x128xi1>, vector<16x128xf32>
    %c3 = arith.constant 3 : index
    %40 = memref.load %arg1[%c3] : memref<15xi32, #tpu.memory_space<smem>>
    %41 = vector.broadcast %40 : i32 to vector<6x128xi32>
    %42 = arith.cmpi sle, %1, %41 : vector<6x128xi32>
    %43 = arith.extui %42 : vector<6x128xi1> to vector<6x128xi32>
    %44 = arith.sitofp %43 : vector<6x128xi32> to vector<6x128xf32>
    %cst_5 = arith.constant dense<0.000000e+00> : vector<128xf32>
    %45 = vector.multi_reduction <add>, %44, %cst_5 [0] : vector<6x128xf32> to vector<128xf32>
    %46 = vector.shape_cast %45 : vector<128xf32> to vector<1x128xf32>
    %c3_i32 = arith.constant 3 : i32
    %47 = vector.broadcast %c3_i32 : i32 to vector<16x128xi32>
    %48 = arith.cmpi eq, %2, %47 : vector<16x128xi32>
    %49 = vector.shape_cast %46 : vector<1x128xf32> to vector<1x128xf32>
    %50 = vector.broadcast %49 : vector<1x128xf32> to vector<16x128xf32>
    %51 = arith.select %48, %50, %39 : vector<16x128xi1>, vector<16x128xf32>
    %c4 = arith.constant 4 : index
    %52 = memref.load %arg1[%c4] : memref<15xi32, #tpu.memory_space<smem>>
    %53 = vector.broadcast %52 : i32 to vector<6x128xi32>
    %54 = arith.cmpi sle, %1, %53 : vector<6x128xi32>
    %55 = arith.extui %54 : vector<6x128xi1> to vector<6x128xi32>
    %56 = arith.sitofp %55 : vector<6x128xi32> to vector<6x128xf32>
    %cst_6 = arith.constant dense<0.000000e+00> : vector<128xf32>
    %57 = vector.multi_reduction <add>, %56, %cst_6 [0] : vector<6x128xf32> to vector<128xf32>
    %58 = vector.shape_cast %57 : vector<128xf32> to vector<1x128xf32>
    %c4_i32 = arith.constant 4 : i32
    %59 = vector.broadcast %c4_i32 : i32 to vector<16x128xi32>
    %60 = arith.cmpi eq, %2, %59 : vector<16x128xi32>
    %61 = vector.shape_cast %58 : vector<1x128xf32> to vector<1x128xf32>
    %62 = vector.broadcast %61 : vector<1x128xf32> to vector<16x128xf32>
    %63 = arith.select %60, %62, %51 : vector<16x128xi1>, vector<16x128xf32>
    %c5 = arith.constant 5 : index
    %64 = memref.load %arg1[%c5] : memref<15xi32, #tpu.memory_space<smem>>
    %65 = vector.broadcast %64 : i32 to vector<6x128xi32>
    %66 = arith.cmpi sle, %1, %65 : vector<6x128xi32>
    %67 = arith.extui %66 : vector<6x128xi1> to vector<6x128xi32>
    %68 = arith.sitofp %67 : vector<6x128xi32> to vector<6x128xf32>
    %cst_7 = arith.constant dense<0.000000e+00> : vector<128xf32>
    %69 = vector.multi_reduction <add>, %68, %cst_7 [0] : vector<6x128xf32> to vector<128xf32>
    %70 = vector.shape_cast %69 : vector<128xf32> to vector<1x128xf32>
    %c5_i32 = arith.constant 5 : i32
    %71 = vector.broadcast %c5_i32 : i32 to vector<16x128xi32>
    %72 = arith.cmpi eq, %2, %71 : vector<16x128xi32>
    %73 = vector.shape_cast %70 : vector<1x128xf32> to vector<1x128xf32>
    %74 = vector.broadcast %73 : vector<1x128xf32> to vector<16x128xf32>
    %75 = arith.select %72, %74, %63 : vector<16x128xi1>, vector<16x128xf32>
    %c6 = arith.constant 6 : index
    %76 = memref.load %arg1[%c6] : memref<15xi32, #tpu.memory_space<smem>>
    %77 = vector.broadcast %76 : i32 to vector<6x128xi32>
    %78 = arith.cmpi sle, %1, %77 : vector<6x128xi32>
    %79 = arith.extui %78 : vector<6x128xi1> to vector<6x128xi32>
    %80 = arith.sitofp %79 : vector<6x128xi32> to vector<6x128xf32>
    %cst_8 = arith.constant dense<0.000000e+00> : vector<128xf32>
    %81 = vector.multi_reduction <add>, %80, %cst_8 [0] : vector<6x128xf32> to vector<128xf32>
    %82 = vector.shape_cast %81 : vector<128xf32> to vector<1x128xf32>
    %c6_i32 = arith.constant 6 : i32
    %83 = vector.broadcast %c6_i32 : i32 to vector<16x128xi32>
    %84 = arith.cmpi eq, %2, %83 : vector<16x128xi32>
    %85 = vector.shape_cast %82 : vector<1x128xf32> to vector<1x128xf32>
    %86 = vector.broadcast %85 : vector<1x128xf32> to vector<16x128xf32>
    %87 = arith.select %84, %86, %75 : vector<16x128xi1>, vector<16x128xf32>
    %c7 = arith.constant 7 : index
    %88 = memref.load %arg1[%c7] : memref<15xi32, #tpu.memory_space<smem>>
    %89 = vector.broadcast %88 : i32 to vector<6x128xi32>
    %90 = arith.cmpi sle, %1, %89 : vector<6x128xi32>
    %91 = arith.extui %90 : vector<6x128xi1> to vector<6x128xi32>
    %92 = arith.sitofp %91 : vector<6x128xi32> to vector<6x128xf32>
    %cst_9 = arith.constant dense<0.000000e+00> : vector<128xf32>
    %93 = vector.multi_reduction <add>, %92, %cst_9 [0] : vector<6x128xf32> to vector<128xf32>
    %94 = vector.shape_cast %93 : vector<128xf32> to vector<1x128xf32>
    %c7_i32 = arith.constant 7 : i32
    %95 = vector.broadcast %c7_i32 : i32 to vector<16x128xi32>
    %96 = arith.cmpi eq, %2, %95 : vector<16x128xi32>
    %97 = vector.shape_cast %94 : vector<1x128xf32> to vector<1x128xf32>
    %98 = vector.broadcast %97 : vector<1x128xf32> to vector<16x128xf32>
    %99 = arith.select %96, %98, %87 : vector<16x128xi1>, vector<16x128xf32>
    %c8 = arith.constant 8 : index
    %100 = memref.load %arg1[%c8] : memref<15xi32, #tpu.memory_space<smem>>
    %101 = vector.broadcast %100 : i32 to vector<6x128xi32>
    %102 = arith.cmpi sle, %1, %101 : vector<6x128xi32>
    %103 = arith.extui %102 : vector<6x128xi1> to vector<6x128xi32>
    %104 = arith.sitofp %103 : vector<6x128xi32> to vector<6x128xf32>
    %cst_10 = arith.constant dense<0.000000e+00> : vector<128xf32>
    %105 = vector.multi_reduction <add>, %104, %cst_10 [0] : vector<6x128xf32> to vector<128xf32>
    %106 = vector.shape_cast %105 : vector<128xf32> to vector<1x128xf32>
    %c8_i32 = arith.constant 8 : i32
    %107 = vector.broadcast %c8_i32 : i32 to vector<16x128xi32>
    %108 = arith.cmpi eq, %2, %107 : vector<16x128xi32>
    %109 = vector.shape_cast %106 : vector<1x128xf32> to vector<1x128xf32>
    %110 = vector.broadcast %109 : vector<1x128xf32> to vector<16x128xf32>
    %111 = arith.select %108, %110, %99 : vector<16x128xi1>, vector<16x128xf32>
    %c9 = arith.constant 9 : index
    %112 = memref.load %arg1[%c9] : memref<15xi32, #tpu.memory_space<smem>>
    %113 = vector.broadcast %112 : i32 to vector<6x128xi32>
    %114 = arith.cmpi sle, %1, %113 : vector<6x128xi32>
    %115 = arith.extui %114 : vector<6x128xi1> to vector<6x128xi32>
    %116 = arith.sitofp %115 : vector<6x128xi32> to vector<6x128xf32>
    %cst_11 = arith.constant dense<0.000000e+00> : vector<128xf32>
    %117 = vector.multi_reduction <add>, %116, %cst_11 [0] : vector<6x128xf32> to vector<128xf32>
    %118 = vector.shape_cast %117 : vector<128xf32> to vector<1x128xf32>
    %c9_i32 = arith.constant 9 : i32
    %119 = vector.broadcast %c9_i32 : i32 to vector<16x128xi32>
    %120 = arith.cmpi eq, %2, %119 : vector<16x128xi32>
    %121 = vector.shape_cast %118 : vector<1x128xf32> to vector<1x128xf32>
    %122 = vector.broadcast %121 : vector<1x128xf32> to vector<16x128xf32>
    %123 = arith.select %120, %122, %111 : vector<16x128xi1>, vector<16x128xf32>
    %c10 = arith.constant 10 : index
    %124 = memref.load %arg1[%c10] : memref<15xi32, #tpu.memory_space<smem>>
    %125 = vector.broadcast %124 : i32 to vector<6x128xi32>
    %126 = arith.cmpi sle, %1, %125 : vector<6x128xi32>
    %127 = arith.extui %126 : vector<6x128xi1> to vector<6x128xi32>
    %128 = arith.sitofp %127 : vector<6x128xi32> to vector<6x128xf32>
    %cst_12 = arith.constant dense<0.000000e+00> : vector<128xf32>
    %129 = vector.multi_reduction <add>, %128, %cst_12 [0] : vector<6x128xf32> to vector<128xf32>
    %130 = vector.shape_cast %129 : vector<128xf32> to vector<1x128xf32>
    %c10_i32 = arith.constant 10 : i32
    %131 = vector.broadcast %c10_i32 : i32 to vector<16x128xi32>
    %132 = arith.cmpi eq, %2, %131 : vector<16x128xi32>
    %133 = vector.shape_cast %130 : vector<1x128xf32> to vector<1x128xf32>
    %134 = vector.broadcast %133 : vector<1x128xf32> to vector<16x128xf32>
    %135 = arith.select %132, %134, %123 : vector<16x128xi1>, vector<16x128xf32>
    %c11 = arith.constant 11 : index
    %136 = memref.load %arg1[%c11] : memref<15xi32, #tpu.memory_space<smem>>
    %137 = vector.broadcast %136 : i32 to vector<6x128xi32>
    %138 = arith.cmpi sle, %1, %137 : vector<6x128xi32>
    %139 = arith.extui %138 : vector<6x128xi1> to vector<6x128xi32>
    %140 = arith.sitofp %139 : vector<6x128xi32> to vector<6x128xf32>
    %cst_13 = arith.constant dense<0.000000e+00> : vector<128xf32>
    %141 = vector.multi_reduction <add>, %140, %cst_13 [0] : vector<6x128xf32> to vector<128xf32>
    %142 = vector.shape_cast %141 : vector<128xf32> to vector<1x128xf32>
    %c11_i32 = arith.constant 11 : i32
    %143 = vector.broadcast %c11_i32 : i32 to vector<16x128xi32>
    %144 = arith.cmpi eq, %2, %143 : vector<16x128xi32>
    %145 = vector.shape_cast %142 : vector<1x128xf32> to vector<1x128xf32>
    %146 = vector.broadcast %145 : vector<1x128xf32> to vector<16x128xf32>
    %147 = arith.select %144, %146, %135 : vector<16x128xi1>, vector<16x128xf32>
    %c12 = arith.constant 12 : index
    %148 = memref.load %arg1[%c12] : memref<15xi32, #tpu.memory_space<smem>>
    %149 = vector.broadcast %148 : i32 to vector<6x128xi32>
    %150 = arith.cmpi sle, %1, %149 : vector<6x128xi32>
    %151 = arith.extui %150 : vector<6x128xi1> to vector<6x128xi32>
    %152 = arith.sitofp %151 : vector<6x128xi32> to vector<6x128xf32>
    %cst_14 = arith.constant dense<0.000000e+00> : vector<128xf32>
    %153 = vector.multi_reduction <add>, %152, %cst_14 [0] : vector<6x128xf32> to vector<128xf32>
    %154 = vector.shape_cast %153 : vector<128xf32> to vector<1x128xf32>
    %c12_i32 = arith.constant 12 : i32
    %155 = vector.broadcast %c12_i32 : i32 to vector<16x128xi32>
    %156 = arith.cmpi eq, %2, %155 : vector<16x128xi32>
    %157 = vector.shape_cast %154 : vector<1x128xf32> to vector<1x128xf32>
    %158 = vector.broadcast %157 : vector<1x128xf32> to vector<16x128xf32>
    %159 = arith.select %156, %158, %147 : vector<16x128xi1>, vector<16x128xf32>
    %c13 = arith.constant 13 : index
    %160 = memref.load %arg1[%c13] : memref<15xi32, #tpu.memory_space<smem>>
    %161 = vector.broadcast %160 : i32 to vector<6x128xi32>
    %162 = arith.cmpi sle, %1, %161 : vector<6x128xi32>
    %163 = arith.extui %162 : vector<6x128xi1> to vector<6x128xi32>
    %164 = arith.sitofp %163 : vector<6x128xi32> to vector<6x128xf32>
    %cst_15 = arith.constant dense<0.000000e+00> : vector<128xf32>
    %165 = vector.multi_reduction <add>, %164, %cst_15 [0] : vector<6x128xf32> to vector<128xf32>
    %166 = vector.shape_cast %165 : vector<128xf32> to vector<1x128xf32>
    %c13_i32 = arith.constant 13 : i32
    %167 = vector.broadcast %c13_i32 : i32 to vector<16x128xi32>
    %168 = arith.cmpi eq, %2, %167 : vector<16x128xi32>
    %169 = vector.shape_cast %166 : vector<1x128xf32> to vector<1x128xf32>
    %170 = vector.broadcast %169 : vector<1x128xf32> to vector<16x128xf32>
    %171 = arith.select %168, %170, %159 : vector<16x128xi1>, vector<16x128xf32>
    %c14 = arith.constant 14 : index
    %172 = memref.load %arg1[%c14] : memref<15xi32, #tpu.memory_space<smem>>
    %173 = vector.broadcast %172 : i32 to vector<6x128xi32>
    %174 = arith.cmpi sle, %1, %173 : vector<6x128xi32>
    %175 = arith.extui %174 : vector<6x128xi1> to vector<6x128xi32>
    %176 = arith.sitofp %175 : vector<6x128xi32> to vector<6x128xf32>
    %cst_16 = arith.constant dense<0.000000e+00> : vector<128xf32>
    %177 = vector.multi_reduction <add>, %176, %cst_16 [0] : vector<6x128xf32> to vector<128xf32>
    %178 = vector.shape_cast %177 : vector<128xf32> to vector<1x128xf32>
    %c14_i32 = arith.constant 14 : i32
    %179 = vector.broadcast %c14_i32 : i32 to vector<16x128xi32>
    %180 = arith.cmpi eq, %2, %179 : vector<16x128xi32>
    %181 = vector.shape_cast %178 : vector<1x128xf32> to vector<1x128xf32>
    %182 = vector.broadcast %181 : vector<1x128xf32> to vector<16x128xf32>
    %183 = arith.select %180, %182, %171 : vector<16x128xi1>, vector<16x128xf32>
    %c0_17 = arith.constant 0 : index
    %c0_18 = arith.constant 0 : index
    %c0_19 = arith.constant 0 : index
    %184 = vector.load %arg3[%c0_17, %c0_18, %c0_19] : memref<1x16x128xf32, #tpu.memory_space<vmem>>, vector<1x16x128xf32>
    %185 = vector.shape_cast %184 : vector<1x16x128xf32> to vector<16x128xf32>
    %186 = vector.shape_cast %183 : vector<16x128xf32> to vector<1x16x128xf32>
    tpu.vector_store %arg3[%c0_17, %c0_18, %c0_19], %186 {strides = array<i32>} : memref<1x16x128xf32, #tpu.memory_space<vmem>>, vector<1x16x128xf32>,
    return
  }
  func.func @transform_0(%arg0: i32, %arg1: memref<15xi32, #tpu.memory_space<smem>>) -> (i32, i32) {
    %c0_i32 = arith.constant 0 : i32
    %c0_i32_0 = arith.constant 0 : i32
    return %arg0, %c0_i32 : i32, i32
  }
  func.func @transform_1(%arg0: i32, %arg1: memref<15xi32, #tpu.memory_space<smem>>) -> (i32, i32, i32) {
    %c0_i32 = arith.constant 0 : i32
    %c0_i32_0 = arith.constant 0 : i32
    %c0_i32_1 = arith.constant 0 : i32
    return %arg0, %c0_i32, %c0_i32_0 : i32, i32, i32
  }
}

</mosaic_0001>

<llo_original>
// kernel: ohem_cross_entropy.1
$region0: #{ohem_cross_entropy.1}
  #allocation0 [shape = 'u32[]', space=smem, size = 0x4, offset = 0x4, fixed_abs, tag = 'smem constant byte address 0x4 - core index']
  #allocation1 [shape = 'u32[72,128]{1,0:T(1,128)}', space=vmem, size = 0x9000, scoped, tag = 'internal scratch']
  %s0 = inlined_call_operand.vmem [shape: f32[2,19,288], index: 0, kind: input, shape index: {}]
  %s1 = inlined_call_operand.vmem [shape: s32[2,1,288], index: 1, kind: input, shape index: {}]
  %s2 = inlined_call_operand.vmem [shape: f32[2,1,384], index: 2, kind: output, shape index: {0}]
  %s3 = inlined_call_operand.vmem [shape: f32[2,1,384], index: 3, kind: output, shape index: {1}]
  %s4 = inlined_call_operand.vmem [shape: f32[2,8,128], index: 4, kind: output, shape index: {2}]
  %5 = xla_tuple %s2, %s3, %s4
  %s6 = sld [smem:[#allocation0]]
  $region57: #{ohem_cross_entropy.1} parent=0
    _
  %s8 = ssub.s32 1, %s6
  %s9 = scalar_select 0, %s8, %s6
  loop: start=0, step=1, limit=4
  $region2: #{ohem_cross_entropy.1} parent=0 // loop_pre_header
    _
  $region3: #{ohem_cross_entropy.1} parent=0 // loop_header
    %s11 = sphi 0, %s15
    %p12 = scmp.ge.s32.totalorder %s11, 4
    %s18 = sphi 0, %s30
    %s19 = sphi 0, %s26
    %s20 = sphi 0, %s18
    %s21 = sphi 0, %s19
    %s22 = sphi 0, %s20
    %s23 = sphi 0, %s21
    %s35 = sphi 0, %s37
    %s38 = sphi 0, %s35
    %s39 = sphi 0, %s38
    %s55 = sphi 0, %s39
    %s63 = sphi 0, %s65
    %s66 = sphi 0, %s63
    %s67 = sphi 0, %s66
    %s83 = sphi 0, %s67
    %s91 = sphi 0, %s93
    %s94 = sphi 0, %s91
    %s95 = sphi 0, %s94
    %s111 = sphi 0, %s95
    %s119 = sphi 0, %s121
    %s122 = sphi 0, %s119
    %s123 = sphi 0, %s122
    %s139 = sphi 0, %s123
    %s147 = sphi 0, %s149
    %s150 = sphi 0, %s147
    %s151 = sphi 0, %s150
    %s167 = sphi 0, %s151
  $region4: #{ohem_cross_entropy.1} parent=0 // loop_header_branch
    %14 = sbr.rel (%p12) target = $region8
  $region5: #{ohem_cross_entropy.1} parent=0 // loop_body
    %s16 = ssub.s32 %s11, 1
    %s17 = ssub.s32 %s11, 2
    %s24 = sadd.s32 1, %s19
    %p25 = scmp.ge.s32.totalorder %s24, 1
    %s26 = scalar_select %p25, 0, %s24
    %s27 = sadd.s32 1, %s18
    %s28 = scalar_select %p25, %s27, %s18
    %p29 = scmp.ge.s32.totalorder %s28, 2
    %s30 = scalar_select %p29, 0, %s28
    %s31 = ssub.s32 %s18, %s30
    %s32 = ssub.s32 %s19, %s26
    %s33 = sor.u32 %s31, %s32
    %p34 = scmp.eq.s32.totalorder %s33, 0
    %s36 = sadd.s32 %s35, 1
    %s37 = scalar_select %p34, %s35, %s36
    %p40 = pneg %p34
    %p41 = scmp.eq.s32.totalorder %s11, 1
    %p42 = por %p40, %p41
    %p43 = scmp.ne.s32.totalorder %s35, %s38
    %p44 = scmp.eq.s32.totalorder %s11, 0
    %p45 = por %p43, %p44
    %p46 = scmp.ne.s32.totalorder %s35, %s38
    %p47 = scmp.eq.s32.totalorder %s16, 1
    %p48 = por %p46, %p47
    %p49 = scmp.ne.s32.totalorder %s38, %s39
    %p50 = scmp.eq.s32.totalorder %s16, 0
    %p51 = por %p49, %p50
    %p52 = scmp.ne.s32.totalorder %s38, %s39
    %p53 = scmp.eq.s32.totalorder %s17, 1
    %p54 = por %p52, %p53
    %p56 = scmp.ne.s32.totalorder %s39, %s55
    %p57 = scmp.eq.s32.totalorder %s17, 0
    %p58 = por %p56, %p57
    %s59 = ssub.s32 %s18, %s30
    %s60 = ssub.s32 %s19, %s26
    %s61 = sor.u32 %s59, %s60
    %p62 = scmp.eq.s32.totalorder %s61, 0
    %s64 = sadd.s32 %s63, 1
    %s65 = scalar_select %p62, %s63, %s64
    %p68 = pneg %p62
    %p69 = scmp.eq.s32.totalorder %s11, 1
    %p70 = por %p68, %p69
    %p71 = scmp.ne.s32.totalorder %s63, %s66
    %p72 = scmp.eq.s32.totalorder %s11, 0
    %p73 = por %p71, %p72
    %p74 = scmp.ne.s32.totalorder %s63, %s66
    %p75 = scmp.eq.s32.totalorder %s16, 1
    %p76 = por %p74, %p75
    %p77 = scmp.ne.s32.totalorder %s66, %s67
    %p78 = scmp.eq.s32.totalorder %s16, 0
    %p79 = por %p77, %p78
    %p80 = scmp.ne.s32.totalorder %s66, %s67
    %p81 = scmp.eq.s32.totalorder %s17, 1
    %p82 = por %p80, %p81
    %p84 = scmp.ne.s32.totalorder %s67, %s83
    %p85 = scmp.eq.s32.totalorder %s17, 0
    %p86 = por %p84, %p85
    %s87 = ssub.s32 %s18, %s30
    %s88 = ssub.s32 %s19, %s26
    %s89 = sor.u32 %s87, %s88
    %p90 = scmp.eq.s32.totalorder %s89, 0
    %s92 = sadd.s32 %s91, 1
    %s93 = scalar_select %p90, %s91, %s92
    %p96 = pneg %p90
    %p97 = scmp.eq.s32.totalorder %s11, 1
    %p98 = por %p96, %p97
    %p99 = scmp.ne.s32.totalorder %s91, %s94
    %p100 = scmp.eq.s32.totalorder %s11, 0
    %p101 = por %p99, %p100
    %p102 = scmp.ne.s32.totalorder %s91, %s94
    %p103 = scmp.eq.s32.totalorder %s16, 1
    %p104 = por %p102, %p103
    %p105 = scmp.ne.s32.totalorder %s94, %s95
    %p106 = scmp.eq.s32.totalorder %s16, 0
    %p107 = por %p105, %p106
    %p108 = scmp.ne.s32.totalorder %s94, %s95
    %p109 = scmp.eq.s32.totalorder %s17, 1
    %p110 = por %p108, %p109
    %p112 = scmp.ne.s32.totalorder %s95, %s111
    %p113 = scmp.eq.s32.totalorder %s17, 0
    %p114 = por %p112, %p113
    %s115 = ssub.s32 %s18, %s30
    %s116 = ssub.s32 %s19, %s26
    %s117 = sor.u32 %s115, %s116
    %p118 = scmp.eq.s32.totalorder %s117, 0
    %s120 = sadd.s32 %s119, 1
    %s121 = scalar_select %p118, %s119, %s120
    %p124 = pneg %p118
    %p125 = scmp.eq.s32.totalorder %s11, 1
    %p126 = por %p124, %p125
    %p127 = scmp.ne.s32.totalorder %s119, %s122
    %p128 = scmp.eq.s32.totalorder %s11, 0
    %p129 = por %p127, %p128
    %p130 = scmp.ne.s32.totalorder %s119, %s122
    %p131 = scmp.eq.s32.totalorder %s16, 1
    %p132 = por %p130, %p131
    %p133 = scmp.ne.s32.totalorder %s122, %s123
    %p134 = scmp.eq.s32.totalorder %s16, 0
    %p135 = por %p133, %p134
    %p136 = scmp.ne.s32.totalorder %s122, %s123
    %p137 = scmp.eq.s32.totalorder %s17, 1
    %p138 = por %p136, %p137
    %p140 = scmp.ne.s32.totalorder %s123, %s139
    %p141 = scmp.eq.s32.totalorder %s17, 0
    %p142 = por %p140, %p141
    %s143 = sadd.s32 %s18, %s19
    %s144 = sadd.s32 %s30, %s26
    %s145 = ssub.s32 %s143, %s144
    %p146 = scmp.eq.s32.totalorder %s145, 0
    %s148 = sadd.s32 %s147, 1
    %s149 = scalar_select %p146, %s147, %s148
    %p152 = pneg %p146
    %p153 = scmp.eq.s32.totalorder %s11, 1
    %p154 = por %p152, %p153
    %p155 = scmp.ne.s32.totalorder %s147, %s150
    %p156 = scmp.eq.s32.totalorder %s11, 0
    %p157 = por %p155, %p156
    %p158 = scmp.ne.s32.totalorder %s147, %s150
    %p159 = scmp.eq.s32.totalorder %s16, 1
    %p160 = por %p158, %p159
    %p161 = scmp.ne.s32.totalorder %s150, %s151
    %p162 = scmp.eq.s32.totalorder %s16, 0
    %p163 = por %p161, %p162
    %p164 = scmp.ne.s32.totalorder %s150, %s151
    %p165 = scmp.eq.s32.totalorder %s17, 1
    %p166 = por %p164, %p165
    %p168 = scmp.ne.s32.totalorder %s151, %s167
    %p169 = scmp.eq.s32.totalorder %s17, 0
    %p170 = por %p168, %p169
    %p171 = scmp.le.s32.totalorder 1, %s11
    %p172 = scmp.lt.s32.totalorder %s11, 3
    %p173 = pnand %p171, %p172
    %p174 = pneg %p173
    // Predicated region
    $region9: #{ohem_cross_entropy.1} parent=5 // pred_check
      _
    $region10: #{ohem_cross_entropy.1} parent=5 // pred_check_branch
      %176 = sbr.rel (%p173) target = $region12
    $region11: #{ohem_cross_entropy.1} parent=5 // pred_region
      %s177 = ssub.s32 %s11, 1
    $region12: #{ohem_cross_entropy.1} parent=5 // pred_fallthru
      _
    %p178 = scmp.lt.s32.totalorder %s11, 2
    // Predicated region
    $region13: #{ohem_cross_entropy.1} parent=5 // pred_check
      %p179 = pneg %p178
    $region14: #{ohem_cross_entropy.1} parent=5 // pred_check_branch
      %181 = sbr.rel (%p179) target = $region16
    $region15: #{ohem_cross_entropy.1} parent=5 // pred_region
      // Predicated region
      $region17: #{ohem_cross_entropy.1} parent=15 // pred_check
        %p182 = pneg %p45
      $region18: #{ohem_cross_entropy.1} parent=15 // pred_check_branch
        %184 = sbr.rel (%p182) target = $region20
      $region19: #{ohem_cross_entropy.1} parent=15 // pred_region
        %s185 = smul.u32 3, %s19
        %p186 = scmp.lt.s32.totalorder %s18, 1
        %s187 = scalar_select %p186, %s18, 1
        %p188 = scmp.lt.s32.totalorder %s185, 2
        %s189 = scalar_select %p188, %s185, 2
        %s190 = smul.addr %s187, 9
        %s191 = sadd.s32 %s189, %s190
        %s192 = smul.addr %s191, 8
        %s193 = scalar_lea.vmem %s0, %s192
        %s194 = smul.u32 3, %s19
      $region20: #{ohem_cross_entropy.1} parent=15 // pred_fallthru
        _
      // Predicated region
      $region21: #{ohem_cross_entropy.1} parent=15 // pred_check
        %p195 = pneg %p73
      $region22: #{ohem_cross_entropy.1} parent=15 // pred_check_branch
        %197 = sbr.rel (%p195) target = $region24
      $region23: #{ohem_cross_entropy.1} parent=15 // pred_region
        %s198 = smul.u32 3, %s19
        %p199 = scmp.lt.s32.totalorder %s18, 1
        %s200 = scalar_select %p199, %s18, 1
        %p201 = scmp.lt.s32.totalorder %s198, 2
        %s202 = scalar_select %p201, %s198, 2
        %s203 = smul.addr %s200, 3
        %s204 = sadd.s32 %s202, %s203
        %s205 = scalar_lea.vmem %s1, %s204
        %s206 = smul.u32 3, %s19
      $region24: #{ohem_cross_entropy.1} parent=15 // pred_fallthru
        _
    $region16: #{ohem_cross_entropy.1} parent=5 // pred_fallthru
      _
    %p207 = scmp.le.s32.totalorder 1, %s11
    %p208 = scmp.lt.s32.totalorder %s11, 3
    %p209 = pnand %p207, %p208
    %p210 = pneg %p209
    // Predicated region
    $region25: #{ohem_cross_entropy.1} parent=5 // pred_check
      _
    $region26: #{ohem_cross_entropy.1} parent=5 // pred_check_branch
      %212 = sbr.rel (%p209) target = $region28
    $region27: #{ohem_cross_entropy.1} parent=5 // pred_region
      %s213 = ssub.s32 %s11, 1
      %s214 = smul.u32 3, %s21
      %p215 = scmp.lt.s32.totalorder %s20, 1
      %s216 = scalar_select %p215, %s20, 1
      %p217 = scmp.lt.s32.totalorder %s214, 2
      %s218 = scalar_select %p217, %s214, 2
      %s219 = smul.addr %s216, 9
      %s220 = sadd.s32 %s218, %s219
      %s221 = smul.addr %s220, 8
      %s222 = scalar_lea.vmem %s0, %s221
      %p223 = pneg %p51
      %p224 = pneg %p48
      %s225 = smul.u32 3, %s21
      %p226 = scmp.lt.s32.totalorder %s20, 1
      %s227 = scalar_select %p226, %s20, 1
      %p228 = scmp.lt.s32.totalorder %s225, 2
      %s229 = scalar_select %p228, %s225, 2
      %s230 = smul.addr %s227, 3
      %s231 = sadd.s32 %s229, %s230
      %s232 = scalar_lea.vmem %s1, %s231
      %p233 = pneg %p79
      %p234 = pneg %p76
      %p235 = pneg %p107
      %p236 = pneg %p104
      %s237 = smul.u32 3, %s21
      %p238 = scmp.lt.s32.totalorder %s20, 1
      %s239 = scalar_select %p238, %s20, 1
      %p240 = scmp.lt.s32.totalorder %s237, 2
      %s241 = scalar_select %p240, %s237, 2
      %s242 = smul.addr %s239, 3
      %s243 = sadd.s32 %s241, %s242
      %s244 = scalar_lea.vmem %s2, %s243
      %p245 = pneg %p135
      %p246 = pneg %p132
      %s247 = smul.u32 3, %s21
      %p248 = scmp.lt.s32.totalorder %s20, 1
      %s249 = scalar_select %p248, %s20, 1
      %p250 = scmp.lt.s32.totalorder %s247, 2
      %s251 = scalar_select %p250, %s247, 2
      %s252 = smul.addr %s249, 3
      %s253 = sadd.s32 %s251, %s252
      %s254 = scalar_lea.vmem %s3, %s253
      %p255 = pneg %p163
      %p256 = pneg %p160
      %s257 = sadd.s32 %s20, %s21
      %p258 = scmp.lt.s32.totalorder %s257, 1
      %s259 = scalar_select %p258, %s257, 1
      %s260 = smul.addr %s259, 8
      %s261 = scalar_lea.vmem %s4, %s260
      %s262 = smul.u32 3, %s21
      %p263 = scmp.lt.s32.totalorder %s20, 1
      %s264 = scalar_select %p263, %s20, 1
      %p265 = scmp.lt.s32.totalorder %s262, 2
      %s266 = scalar_select %p265, %s262, 2
      %s267 = smul.addr %s264, 9
      %s268 = sadd.s32 %s266, %s267
      %s269 = smul.addr %s268, 8
      %s270 = scalar_lea.vmem %s0, %s269
      %s271 = smul.u32 3, %s21
      %s272 = smul.u32 3, %s21
      %p273 = scmp.lt.s32.totalorder %s20, 1
      %s274 = scalar_select %p273, %s20, 1
      %p275 = scmp.lt.s32.totalorder %s272, 2
      %s276 = scalar_select %p275, %s272, 2
      %s277 = smul.addr %s274, 3
      %s278 = sadd.s32 %s276, %s277
      %s279 = scalar_lea.vmem %s1, %s278
      %s280 = smul.u32 3, %s21
      %s281 = smul.u32 3, %s21
      %p282 = scmp.lt.s32.totalorder %s20, 1
      %s283 = scalar_select %p282, %s20, 1
      %p284 = scmp.lt.s32.totalorder %s281, 2
      %s285 = scalar_select %p284, %s281, 2
      %s286 = smul.addr %s283, 3
      %s287 = sadd.s32 %s285, %s286
      %s288 = scalar_lea.vmem %s2, %s287
      %s289 = smul.u32 3, %s21
      %s290 = smul.u32 3, %s21
      %p291 = scmp.lt.s32.totalorder %s20, 1
      %s292 = scalar_select %p291, %s20, 1
      %p293 = scmp.lt.s32.totalorder %s290, 2
      %s294 = scalar_select %p293, %s290, 2
      %s295 = smul.addr %s292, 3
      %s296 = sadd.s32 %s294, %s295
      %s297 = scalar_lea.vmem %s3, %s296
      %s298 = smul.u32 3, %s21
      %s299 = sadd.s32 %s20, %s21
      %p300 = scmp.lt.s32.totalorder %s299, 1
      %s301 = scalar_select %p300, %s299, 1
      %s302 = smul.addr %s301, 8
      %s303 = scalar_lea.vmem %s4, %s302
      %s304 = sadd.s32 %s20, %s21
      %v305 = vld [vmem:[%s270] sm:$0xff]
      %v306 = vld [vmem:[%s270 + $0x8] sm:$0xff]
      %v307 = vld [vmem:[%s270 + $0x10] sm:$0xff]
      %v308 = vld [vmem:[%s270 + $0x18] sm:$0xff]
      %v309 = vld [vmem:[%s270 + $0x20] sm:$0xff]
      %v310 = vld [vmem:[%s270 + $0x28] sm:$0xff]
      %v311 = vld [vmem:[%s270 + $0x30] sm:$0x7]
      %v312 = vld [vmem:[%s270 + $0x38] sm:$0x7]
      %v313 = vld [vmem:[%s270 + $0x40] sm:$0x7]
      %v314 = vld [vmem:[%s279] sm:$0x7]
      %vm315 = vcmp.ne.s32.totalorder %v314, 4294967295
      %s316 = smul.u32 %s21, 384
      %v317 = vlaneseq
      %v318 = vand.u32 %v317, 127
      %v319 = vadd.s32 %v318, 128
      %v320 = vadd.s32 %v318, 256
      %v321 = vstv %s316
      %v322 = vadd.s32 %v321, %v318
      %v323 = vadd.s32 %v321, %v319
      %v324 = vadd.s32 %v321, %v320
      %vm325 = vcmp.lt.s32.totalorder %v322, 288
      %vm326 = vcmp.lt.s32.totalorder %v323, 288
      %vm327 = vcmp.lt.s32.totalorder %v324, 288
      %v328 = vsel %vm325, 1, 0
      %v329 = vsel %vm326, 1, 0
      %v330 = vsel %vm327, 1, 0
      %v331 = vrot.slane %v329, 7
      %v332 = vrot.slane %v330, 6
      %vm333 = vcmask 1040384
      %v334 = vsel %vm333, %v328, %v331
      %vm335 = vcmask 1041408
      %v336 = vsel %vm335, %v334, %v332
      %vm337 = vcmp.ne.s32.totalorder %v336, 0
      %vm338 = vmand %vm315, %vm337
      %v339 = vsel %vm338, %v314, 0
      %vm340 = vcmask 1042432
      %v341 = vsel %vm340, %v311, -inf
      %v342 = vmax.f32 %v305, %v341
      %v343 = vmax.f32 %v342, %v308
      %v344 = vrot.slane %v343, 4
      %v345 = vmax.f32 %v343, %v344
      %v346 = vrot.slane %v345, 2
      %v347 = vmax.f32 %v345, %v346
      %v348 = vrot.slane %v347, 1
      %v349 = vmax.f32 %v347, %v348
      %v350 = vsel %vm340, %v312, -inf
      %v351 = vmax.f32 %v306, %v350
      %v352 = vmax.f32 %v351, %v309
      %v353 = vrot.slane %v352, 4
      %v354 = vmax.f32 %v352, %v353
      %v355 = vrot.slane %v354, 2
      %v356 = vmax.f32 %v354, %v355
      %v357 = vrot.slane %v356, 1
      %v358 = vmax.f32 %v356, %v357
      %v359 = vsel %vm340, %v313, -inf
      %v360 = vmax.f32 %v307, %v359
      %v361 = vmax.f32 %v360, %v310
      %v362 = vrot.slane %v361, 4
      %v363 = vmax.f32 %v361, %v362
      %v364 = vrot.slane %v363, 2
      %v365 = vmax.f32 %v363, %v364
      %v366 = vrot.slane %v365, 1
      %v367 = vmax.f32 %v365, %v366
      %v368 = vsub.f32 %v305, %v349
      %v369 = vsub.f32 %v306, %v358
      %v370 = vsub.f32 %v307, %v367
      %v371 = vsub.f32 %v308, %v349
      %v372 = vsub.f32 %v309, %v358
      %v373 = vsub.f32 %v310, %v367
      %v374 = vsub.f32 %v311, %v349
      %v375 = vsub.f32 %v312, %v358
      %v376 = vsub.f32 %v313, %v367
      %v377 = vmul.f32 %v368, 1.442695
      %v378 = vpow.pop %v377
      %v379 = vmul.f32 %v369, 1.442695
      %v380 = vpow.pop %v379
      %v381 = vmul.f32 %v370, 1.442695
      %v382 = vpow.pop %v381
      %v383 = vmul.f32 %v371, 1.442695
      %v384 = vpow.pop %v383
      %v385 = vmul.f32 %v372, 1.442695
      %v386 = vpow.pop %v385
      %v387 = vmul.f32 %v373, 1.442695
      %v388 = vpow.pop %v387
      %v389 = vmul.f32 %v374, 1.442695
      %v390 = vpow.pop %v389
      %v391 = vmul.f32 %v375, 1.442695
      %v392 = vpow.pop %v391
      %v393 = vmul.f32 %v376, 1.442695
      %v394 = vpow.pop %v393
      %v395 = vadd.f32 %v378, %v384
      %v396 = vsel %vm340, %v390, 0.0
      %v397 = vadd.f32 %v395, %v396
      %v398 = vrot.slane %v397, 4
      %v399 = vadd.f32 %v397, %v398
      %v400 = vrot.slane %v399, 2
      %v401 = vadd.f32 %v399, %v400
      %v402 = vrot.slane %v401, 1
      %v403 = vadd.f32 %v401, %v402
      %v404 = vadd.f32 %v380, %v386
      %v405 = vsel %vm340, %v392, 0.0
      %v406 = vadd.f32 %v404, %v405
      %v407 = vrot.slane %v406, 4
      %v408 = vadd.f32 %v406, %v407
      %v409 = vrot.slane %v408, 2
      %v410 = vadd.f32 %v408, %v409
      %v411 = vrot.slane %v410, 1
      %v412 = vadd.f32 %v410, %v411
      %v413 = vadd.f32 %v382, %v388
      %v414 = vsel %vm340, %v394, 0.0
      %v415 = vadd.f32 %v413, %v414
      %v416 = vrot.slane %v415, 4
      %v417 = vadd.f32 %v415, %v416
      %v418 = vrot.slane %v417, 2
      %v419 = vadd.f32 %v417, %v418
      %v420 = vrot.slane %v419, 1
      %v421 = vadd.f32 %v419, %v420
      %v422 = vlaneseq
      %v423 = vshrl.u32 %v422, 7
      %v424 = vadd.s32 %v423, 8
      %v425 = vadd.s32 %v423, 16
      %v426 = vperm.slane %v339, 0
      %v427 = vperm.slane %v339, 1
      %v428 = vperm.slane %v339, 2
      %vm429 = vcmp.eq.s32.totalorder %v423, %v426
      %vm430 = vcmp.eq.s32.totalorder %v423, %v427
      %vm431 = vcmp.eq.s32.totalorder %v423, %v428
      %vm432 = vcmp.eq.s32.totalorder %v424, %v426
      %vm433 = vcmp.eq.s32.totalorder %v424, %v427
      %vm434 = vcmp.eq.s32.totalorder %v424, %v428
      %vm435 = vcmp.eq.s32.totalorder %v425, %v426
      %vm436 = vcmp.eq.s32.totalorder %v425, %v427
      %vm437 = vcmp.eq.s32.totalorder %v425, %v428
      %v438 = vsel %vm429, %v305, 0.0
      %v439 = vsel %vm430, %v306, 0.0
      %v440 = vsel %vm431, %v307, 0.0
      %v441 = vsel %vm432, %v308, 0.0
      %v442 = vsel %vm433, %v309, 0.0
      %v443 = vsel %vm434, %v310, 0.0
      %v444 = vsel %vm435, %v311, 0.0
      %v445 = vsel %vm436, %v312, 0.0
      %v446 = vsel %vm437, %v313, 0.0
      %v447 = vadd.f32 %v438, %v441
      %v448 = vsel %vm340, %v444, 0.0
      %v449 = vadd.f32 %v447, %v448
      %v450 = vrot.slane %v449, 4
      %v451 = vadd.f32 %v449, %v450
      %v452 = vrot.slane %v451, 2
      %v453 = vadd.f32 %v451, %v452
      %v454 = vrot.slane %v453, 1
      %v455 = vadd.f32 %v453, %v454
      %v456 = vadd.f32 %v439, %v442
      %v457 = vsel %vm340, %v445, 0.0
      %v458 = vadd.f32 %v456, %v457
      %v459 = vrot.slane %v458, 4
      %v460 = vadd.f32 %v458, %v459
      %v461 = vrot.slane %v460, 2
      %v462 = vadd.f32 %v460, %v461
      %v463 = vrot.slane %v462, 1
      %v464 = vadd.f32 %v462, %v463
      %v465 = vadd.f32 %v440, %v443
      %v466 = vsel %vm340, %v446, 0.0
      %v467 = vadd.f32 %v465, %v466
      %v468 = vrot.slane %v467, 4
      %v469 = vadd.f32 %v467, %v468
      %v470 = vrot.slane %v469, 2
      %v471 = vadd.f32 %v469, %v470
      %v472 = vrot.slane %v471, 1
      %v473 = vadd.f32 %v471, %v472
      %v474 = vlog2.pop %v403
      %v475 = vmul.f32 %v474, 0.6931472
      %v476 = vlog2.pop %v412
      %v477 = vmul.f32 %v476, 0.6931472
      %v478 = vlog2.pop %v421
      %v479 = vmul.f32 %v478, 0.6931472
      %v480 = vsub.f32 %v349, %v455
      %v481 = vsub.f32 %v358, %v464
      %v482 = vsub.f32 %v367, %v473
      %v483 = vadd.f32 %v475, %v480
      %v484 = vadd.f32 %v477, %v481
      %v485 = vadd.f32 %v479, %v482
      %v486 = vsub.f32 %v455, %v349
      %v487 = vsub.f32 %v464, %v358
      %v488 = vsub.f32 %v473, %v367
      %v489 = vmul.f32 %v486, 1.442695
      %v490 = vpow.pop %v489
      %v491 = vmul.f32 %v487, 1.442695
      %v492 = vpow.pop %v491
      %v493 = vmul.f32 %v488, 1.442695
      %v494 = vpow.pop %v493
      %v495 = vrcp.pop %v403
      %v496 = vmul.f32 %v403, %v495
      %v497 = vsub.f32 1.0, %v496
      %v498 = vmul.f32 %v495, %v497
      %v499 = vadd.f32 %v495, %v498
      %vm500 = vweird.f32 %v403
      %vm501 = vweird.f32 %v495
      %vm502 = vmor %vm500, %vm501
      %v503 = vsel %vm502, %v495, %v499
      %v504 = vand.u32 2147483647, %v403
      %vm505 = vcmp.eq.f32.partialorder %v504, 8.507059e+37
      %v506 = vand.u32 %v403, 2147483648
      %v507 = vor.u32 1.1754944e-38, %v506
      %v508 = vsel %vm505, %v507, %v503
      %v509 = vmul.f32 %v490, %v508
      %v510 = vrcp.pop %v412
      %v511 = vmul.f32 %v412, %v510
      %v512 = vsub.f32 1.0, %v511
      %v513 = vmul.f32 %v510, %v512
      %v514 = vadd.f32 %v510, %v513
      %vm515 = vweird.f32 %v412
      %vm516 = vweird.f32 %v510
      %vm517 = vmor %vm515, %vm516
      %v518 = vsel %vm517, %v510, %v514
      %v519 = vand.u32 2147483647, %v412
      %vm520 = vcmp.eq.f32.partialorder %v519, 8.507059e+37
      %v521 = vand.u32 %v412, 2147483648
      %v522 = vor.u32 1.1754944e-38, %v521
      %v523 = vsel %vm520, %v522, %v518
      %v524 = vmul.f32 %v492, %v523
      %v525 = vrcp.pop %v421
      %v526 = vmul.f32 %v421, %v525
      %v527 = vsub.f32 1.0, %v526
      %v528 = vmul.f32 %v525, %v527
      %v529 = vadd.f32 %v525, %v528
      %vm530 = vweird.f32 %v421
      %vm531 = vweird.f32 %v525
      %vm532 = vmor %vm530, %vm531
      %v533 = vsel %vm532, %v525, %v529
      %v534 = vand.u32 2147483647, %v421
      %vm535 = vcmp.eq.f32.partialorder %v534, 8.507059e+37
      %v536 = vand.u32 %v421, 2147483648
      %v537 = vor.u32 1.1754944e-38, %v536
      %v538 = vsel %vm535, %v537, %v533
      %v539 = vmul.f32 %v494, %v538
      %v543 = vrot.slane %v484, 7
      %v544 = vrot.slane %v485, 6
      %v545 = vsel %vm333, %v483, %v543
      %v546 = vsel %vm335, %v545, %v544
      %v548 = vsel %vm338, %v546, 0.0
      %v552 = vrot.slane %v524, 7
      %v553 = vrot.slane %v539, 6
      %v554 = vsel %vm333, %v509, %v552
      %v555 = vsel %vm335, %v554, %v553
      %v557 = vsel %vm338, %v555, inf
      %v558 = vlaneseq
      %vm559 = vcmp.ge.s32.totalorder %v558, 0
      %vm560 = vcmp.lt.s32.totalorder %v558, 384
      %vm561 = vmand %vm559, %vm560
      %562 = vst.msk [vmem:[%s288] sm:$0x7] %vm561, %v548
      %563 = vst.msk [vmem:[%s297] sm:$0x7] %vm561, %v557
      %vm564 = vcmp.lt.f32.partialorder %v557, 0.7
      %v565 = vsel %vm338, 1, 0
      %v566 = vcvt.s32.f32 %v565
      %v568 = vperm.slane %v566, 0
      %v569 = vperm.slane %v566, 1
      %v570 = vperm.slane %v566, 2
      %v574 = vsel %vm333, %v568, 0.0
      %v575 = vsel %vm333, %v569, 0.0
      %v576 = vadd.f32 %v574, %v575
      %v577 = vsel %vm333, %v570, 0.0
      %v578 = vadd.f32 %v576, %v577
      %579 = vadd.xlane.f32.xlu0 %v578
      %v580 = vpop.xlane.xlu0 %579
      %vm581 = vcmp.le.f32.partialorder %v557, 0.7
      %v582 = vsel %vm581, 1, 0
      %v583 = vcvt.s32.f32 %v582
      %v585 = vperm.slane %v583, 0
      %v586 = vperm.slane %v583, 1
      %v587 = vperm.slane %v583, 2
      %v591 = vsel %vm333, %v585, 0.0
      %v592 = vsel %vm333, %v586, 0.0
      %v593 = vadd.f32 %v591, %v592
      %v594 = vsel %vm333, %v587, 0.0
      %v595 = vadd.f32 %v593, %v594
      %596 = vadd.xlane.f32.xlu0 %v595
      %v597 = vpop.xlane.xlu0 %596
      %v598 = vsel %vm564, 1, 0
      %v599 = vcvt.s32.f32 %v598
      %v601 = vperm.slane %v599, 0
      %v602 = vperm.slane %v599, 1
      %v603 = vperm.slane %v599, 2
      %v607 = vsel %vm333, %v601, 0.0
      %v608 = vsel %vm333, %v602, 0.0
      %v609 = vadd.f32 %v607, %v608
      %v610 = vsel %vm333, %v603, 0.0
      %v611 = vadd.f32 %v609, %v610
      %612 = vadd.xlane.f32.xlu0 %v611
      %v613 = vpop.xlane.xlu0 %612
      %v614 = vsel %vm564, %v548, 0.0
      %v616 = vperm.slane %v614, 0
      %v617 = vperm.slane %v614, 1
      %v618 = vperm.slane %v614, 2
      %v622 = vsel %vm333, %v616, 0.0
      %v623 = vsel %vm333, %v617, 0.0
      %v624 = vadd.f32 %v622, %v623
      %v625 = vsel %vm333, %v618, 0.0
      %v626 = vadd.f32 %v624, %v625
      %627 = vadd.xlane.f32.xlu0 %v626
      %v628 = vpop.xlane.xlu0 %627
      %vm629 = vcmp.eq.s32.totalorder %v423, 0
      %vm630 = vcmp.eq.s32.totalorder %v423, 1
      %vm631 = vcmp.eq.s32.totalorder %v423, 2
      %vm632 = vcmp.eq.s32.totalorder %v423, 3
      %v633 = vperm.slane %v628, 0
      %v634 = vsel %vm632, %v633, 0.0
      %v635 = vperm.slane %v613, 0
      %v636 = vsel %vm631, %v635, %v634
      %v637 = vperm.slane %v597, 0
      %v638 = vsel %vm630, %v637, %v636
      %v639 = vperm.slane %v580, 0
      %v640 = vsel %vm629, %v639, %v638
      %641 = vst [vmem:[%s303] sm:$0xff] %v640
      %s642 = smul.u32 3, %s21
      %p643 = scmp.lt.s32.totalorder %s20, 1
      %s644 = scalar_select %p643, %s20, 1
      %p645 = scmp.lt.s32.totalorder %s642, 2
      %s646 = scalar_select %p645, %s642, 2
      %s647 = smul.addr %s644, 3
      %s648 = sadd.s32 %s646, %s647
      %s649 = scalar_lea.vmem %s2, %s648
      %s650 = smul.u32 3, %s21
      %p651 = scmp.lt.s32.totalorder %s20, 1
      %s652 = scalar_select %p651, %s20, 1
      %p653 = scmp.lt.s32.totalorder %s650, 2
      %s654 = scalar_select %p653, %s650, 2
      %s655 = smul.addr %s652, 3
      %s656 = sadd.s32 %s654, %s655
      %s657 = scalar_lea.vmem %s3, %s656
      %s658 = sadd.s32 %s20, %s21
      %p659 = scmp.lt.s32.totalorder %s658, 1
      %s660 = scalar_select %p659, %s658, 1
      %s661 = smul.addr %s660, 8
      %s662 = scalar_lea.vmem %s4, %s661
      // Predicated region
      $region29: #{ohem_cross_entropy.1} parent=27 // pred_check
        %p663 = pneg %p104
      $region30: #{ohem_cross_entropy.1} parent=27 // pred_check_branch
        %665 = sbr.rel (%p663) target = $region32
      $region31: #{ohem_cross_entropy.1} parent=27 // pred_region
        %s666 = smul.u32 3, %s21
      $region32: #{ohem_cross_entropy.1} parent=27 // pred_fallthru
        _
      // Predicated region
      $region33: #{ohem_cross_entropy.1} parent=27 // pred_check
        %p667 = pneg %p132
      $region34: #{ohem_cross_entropy.1} parent=27 // pred_check_branch
        %669 = sbr.rel (%p667) target = $region36
      $region35: #{ohem_cross_entropy.1} parent=27 // pred_region
        %s670 = smul.u32 3, %s21
      $region36: #{ohem_cross_entropy.1} parent=27 // pred_fallthru
        _
      // Predicated region
      $region37: #{ohem_cross_entropy.1} parent=27 // pred_check
        %p671 = pneg %p160
      $region38: #{ohem_cross_entropy.1} parent=27 // pred_check_branch
        %673 = sbr.rel (%p671) target = $region40
      $region39: #{ohem_cross_entropy.1} parent=27 // pred_region
        %s674 = sadd.s32 %s20, %s21
      $region40: #{ohem_cross_entropy.1} parent=27 // pred_fallthru
        _
    $region28: #{ohem_cross_entropy.1} parent=5 // pred_fallthru
      _
    %p675 = scmp.le.s32.totalorder 2, %s11
    // Predicated region
    $region41: #{ohem_cross_entropy.1} parent=5 // pred_check
      %p676 = pneg %p675
    $region42: #{ohem_cross_entropy.1} parent=5 // pred_check_branch
      %678 = sbr.rel (%p676) target = $region44
    $region43: #{ohem_cross_entropy.1} parent=5 // pred_region
      %s679 = ssub.s32 %s11, 2
      // Predicated region
      $region45: #{ohem_cross_entropy.1} parent=43 // pred_check
        %p680 = pneg %p110
      $region46: #{ohem_cross_entropy.1} parent=43 // pred_check_branch
        %682 = sbr.rel (%p680) target = $region48
      $region47: #{ohem_cross_entropy.1} parent=43 // pred_region
        %s683 = smul.u32 3, %s23
        %p684 = scmp.lt.s32.totalorder %s22, 1
        %s685 = scalar_select %p684, %s22, 1
        %p686 = scmp.lt.s32.totalorder %s683, 2
        %s687 = scalar_select %p686, %s683, 2
        %s688 = smul.addr %s685, 3
        %s689 = sadd.s32 %s687, %s688
        %s690 = scalar_lea.vmem %s2, %s689
      $region48: #{ohem_cross_entropy.1} parent=43 // pred_fallthru
        _
      // Predicated region
      $region49: #{ohem_cross_entropy.1} parent=43 // pred_check
        %p691 = pneg %p138
      $region50: #{ohem_cross_entropy.1} parent=43 // pred_check_branch
        %693 = sbr.rel (%p691) target = $region52
      $region51: #{ohem_cross_entropy.1} parent=43 // pred_region
        %s694 = smul.u32 3, %s23
        %p695 = scmp.lt.s32.totalorder %s22, 1
        %s696 = scalar_select %p695, %s22, 1
        %p697 = scmp.lt.s32.totalorder %s694, 2
        %s698 = scalar_select %p697, %s694, 2
        %s699 = smul.addr %s696, 3
        %s700 = sadd.s32 %s698, %s699
        %s701 = scalar_lea.vmem %s3, %s700
      $region52: #{ohem_cross_entropy.1} parent=43 // pred_fallthru
        _
      // Predicated region
      $region53: #{ohem_cross_entropy.1} parent=43 // pred_check
        %p702 = pneg %p166
      $region54: #{ohem_cross_entropy.1} parent=43 // pred_check_branch
        %704 = sbr.rel (%p702) target = $region56
      $region55: #{ohem_cross_entropy.1} parent=43 // pred_region
        %s705 = sadd.s32 %s22, %s23
        %p706 = scmp.lt.s32.totalorder %s705, 1
        %s707 = scalar_select %p706, %s705, 1
        %s708 = smul.addr %s707, 8
        %s709 = scalar_lea.vmem %s4, %s708
      $region56: #{ohem_cross_entropy.1} parent=43 // pred_fallthru
        _
    $region44: #{ohem_cross_entropy.1} parent=5 // pred_fallthru
      _
  $region6: #{ohem_cross_entropy.1} parent=0 // loop_footer
    %s15 = sadd.s32 1, %s11
  $region7: #{ohem_cross_entropy.1} parent=0 // loop_footer_branch
    %10 = sbr.rel target = $region3
  $region8: #{ohem_cross_entropy.1} parent=0 // loop_exit
    _

// kernel: body.8
$region0: #{body.8}
  #allocation0 [shape = 'u32[]', space=smem, size = 0x4, offset = 0x4, fixed_abs, tag = 'smem constant byte address 0x4 - core index']
  #allocation1 [shape = 'u32[72,128]{1,0:T(1,128)}', space=vmem, size = 0x9000, scoped, tag = 'internal scratch']
  #allocation2 [shape = 's32[1]{0}', space=sflag, size = 0x4, scoped, tag = 'scoped memory for body.8']
  #allocation3 [shape = 'u8[512]{0}', space=smem, size = 0x200, scoped, tag = 'prefetched SMEM operand 0']
  %s0 = inlined_call_operand.vmem [shape: s32[15], index: 0, kind: input, shape index: {}]
  %s1 = inlined_call_operand.vmem [shape: f32[6,128], index: 1, kind: input, shape index: {}]
  %s2 = inlined_call_operand.vmem [shape: f32[1,16,128], index: 2, kind: output, shape index: {}]
  %s3 = sld [smem:[#allocation0]]
  $region14: #{body.8} parent=0
    _
  %s5 = ssub.s32 1, %s3
  %s6 = scalar_select 0, %s5, %s3
  %s8 = sshll.u32 %s0, 4
  %s9 = int_to_ptr.vmem [resolvable:$true] %s8
  %11 = dma.vmem_to_smem %s9, 16, [#allocation3], [#allocation2]
  %13 = dma.done [#allocation2], 16
  %14 = sfence
  // Predicated region
  $region2: #{body.8} parent=0 // pred_check
    _
  $region3: #{body.8} parent=0 // pred_check_branch
    %16 = sbr.rel (0) target = $region5
  $region4: #{body.8} parent=0 // pred_region
    _
  $region5: #{body.8} parent=0 // pred_fallthru
    _
  %v17 = vld [vmem:[%s1] sm:$0x3f]
  %v19 = vlaneseq
  %v20 = vshrl.u32 %v19, 7
  %v21 = vadd.s32 %v20, 8
  %s22 = sld [smem:[#allocation3]]
  %v23 = vstv %s22
  %vm24 = vcmp.le.s32.totalorder %v17, %v23
  %v25 = vsel %vm24, 1, 0
  %v26 = vcvt.s32.f32 %v25
  %vm27 = vcmask 1045504
  %v28 = vsel %vm27, %v26, 0.0
  %v29 = vrot.slane %v28, 4
  %v30 = vadd.f32 %v28, %v29
  %v31 = vrot.slane %v30, 2
  %v32 = vadd.f32 %v30, %v31
  %v33 = vrot.slane %v32, 1
  %v34 = vadd.f32 %v32, %v33
  %vm35 = vcmp.eq.s32.totalorder %v20, 0
  %vm36 = vcmp.eq.s32.totalorder %v21, 0
  %v37 = vsel %vm35, %v34, 0.0
  %v38 = vsel %vm36, %v34, 0.0
  %s39 = sld [smem:[#allocation3 + $0x1]]
  %v40 = vstv %s39
  %vm41 = vcmp.le.s32.totalorder %v17, %v40
  %v42 = vsel %vm41, 1, 0
  %v43 = vcvt.s32.f32 %v42
  %v44 = vsel %vm27, %v43, 0.0
  %v45 = vrot.slane %v44, 4
  %v46 = vadd.f32 %v44, %v45
  %v47 = vrot.slane %v46, 2
  %v48 = vadd.f32 %v46, %v47
  %v49 = vrot.slane %v48, 1
  %v50 = vadd.f32 %v48, %v49
  %vm51 = vcmp.eq.s32.totalorder %v20, 1
  %vm52 = vcmp.eq.s32.totalorder %v21, 1
  %v53 = vsel %vm51, %v50, %v37
  %v54 = vsel %vm52, %v50, %v38
  %s55 = sld [smem:[#allocation3 + $0x2]]
  %v56 = vstv %s55
  %vm57 = vcmp.le.s32.totalorder %v17, %v56
  %v58 = vsel %vm57, 1, 0
  %v59 = vcvt.s32.f32 %v58
  %v60 = vsel %vm27, %v59, 0.0
  %v61 = vrot.slane %v60, 4
  %v62 = vadd.f32 %v60, %v61
  %v63 = vrot.slane %v62, 2
  %v64 = vadd.f32 %v62, %v63
  %v65 = vrot.slane %v64, 1
  %v66 = vadd.f32 %v64, %v65
  %vm67 = vcmp.eq.s32.totalorder %v20, 2
  %vm68 = vcmp.eq.s32.totalorder %v21, 2
  %v69 = vsel %vm67, %v66, %v53
  %v70 = vsel %vm68, %v66, %v54
  %s71 = sld [smem:[#allocation3 + $0x3]]
  %v72 = vstv %s71
  %vm73 = vcmp.le.s32.totalorder %v17, %v72
  %v74 = vsel %vm73, 1, 0
  %v75 = vcvt.s32.f32 %v74
  %v76 = vsel %vm27, %v75, 0.0
  %v77 = vrot.slane %v76, 4
  %v78 = vadd.f32 %v76, %v77
  %v79 = vrot.slane %v78, 2
  %v80 = vadd.f32 %v78, %v79
  %v81 = vrot.slane %v80, 1
  %v82 = vadd.f32 %v80, %v81
  %vm83 = vcmp.eq.s32.totalorder %v20, 3
  %vm84 = vcmp.eq.s32.totalorder %v21, 3
  %v85 = vsel %vm83, %v82, %v69
  %v86 = vsel %vm84, %v82, %v70
  %s87 = sld [smem:[#allocation3 + $0x4]]
  %v88 = vstv %s87
  %vm89 = vcmp.le.s32.totalorder %v17, %v88
  %v90 = vsel %vm89, 1, 0
  %v91 = vcvt.s32.f32 %v90
  %v92 = vsel %vm27, %v91, 0.0
  %v93 = vrot.slane %v92, 4
  %v94 = vadd.f32 %v92, %v93
  %v95 = vrot.slane %v94, 2
  %v96 = vadd.f32 %v94, %v95
  %v97 = vrot.slane %v96, 1
  %v98 = vadd.f32 %v96, %v97
  %vm99 = vcmp.eq.s32.totalorder %v20, 4
  %vm100 = vcmp.eq.s32.totalorder %v21, 4
  %v101 = vsel %vm99, %v98, %v85
  %v102 = vsel %vm100, %v98, %v86
  %s103 = sld [smem:[#allocation3 + $0x5]]
  %v104 = vstv %s103
  %vm105 = vcmp.le.s32.totalorder %v17, %v104
  %v106 = vsel %vm105, 1, 0
  %v107 = vcvt.s32.f32 %v106
  %v108 = vsel %vm27, %v107, 0.0
  %v109 = vrot.slane %v108, 4
  %v110 = vadd.f32 %v108, %v109
  %v111 = vrot.slane %v110, 2
  %v112 = vadd.f32 %v110, %v111
  %v113 = vrot.slane %v112, 1
  %v114 = vadd.f32 %v112, %v113
  %vm115 = vcmp.eq.s32.totalorder %v20, 5
  %vm116 = vcmp.eq.s32.totalorder %v21, 5
  %v117 = vsel %vm115, %v114, %v101
  %v118 = vsel %vm116, %v114, %v102
  %s119 = sld [smem:[#allocation3 + $0x6]]
  %v120 = vstv %s119
  %vm121 = vcmp.le.s32.totalorder %v17, %v120
  %v122 = vsel %vm121, 1, 0
  %v123 = vcvt.s32.f32 %v122
  %v124 = vsel %vm27, %v123, 0.0
  %v125 = vrot.slane %v124, 4
  %v126 = vadd.f32 %v124, %v125
  %v127 = vrot.slane %v126, 2
  %v128 = vadd.f32 %v126, %v127
  %v129 = vrot.slane %v128, 1
  %v130 = vadd.f32 %v128, %v129
  %vm131 = vcmp.eq.s32.totalorder %v20, 6
  %vm132 = vcmp.eq.s32.totalorder %v21, 6
  %v133 = vsel %vm131, %v130, %v117
  %v134 = vsel %vm132, %v130, %v118
  %s135 = sld [smem:[#allocation3 + $0x7]]
  %v136 = vstv %s135
  %vm137 = vcmp.le.s32.totalorder %v17, %v136
  %v138 = vsel %vm137, 1, 0
  %v139 = vcvt.s32.f32 %v138
  %v140 = vsel %vm27, %v139, 0.0
  %v141 = vrot.slane %v140, 4
  %v142 = vadd.f32 %v140, %v141
  %v143 = vrot.slane %v142, 2
  %v144 = vadd.f32 %v142, %v143
  %v145 = vrot.slane %v144, 1
  %v146 = vadd.f32 %v144, %v145
  %vm147 = vcmp.eq.s32.totalorder %v20, 7
  %vm148 = vcmp.eq.s32.totalorder %v21, 7
  %v149 = vsel %vm147, %v146, %v133
  %v150 = vsel %vm148, %v146, %v134
  %s151 = sld [smem:[#allocation3 + $0x8]]
  %v152 = vstv %s151
  %vm153 = vcmp.le.s32.totalorder %v17, %v152
  %v154 = vsel %vm153, 1, 0
  %v155 = vcvt.s32.f32 %v154
  %v156 = vsel %vm27, %v155, 0.0
  %v157 = vrot.slane %v156, 4
  %v158 = vadd.f32 %v156, %v157
  %v159 = vrot.slane %v158, 2
  %v160 = vadd.f32 %v158, %v159
  %v161 = vrot.slane %v160, 1
  %v162 = vadd.f32 %v160, %v161
  %vm163 = vcmp.eq.s32.totalorder %v20, 8
  %vm164 = vcmp.eq.s32.totalorder %v21, 8
  %v165 = vsel %vm163, %v162, %v149
  %v166 = vsel %vm164, %v162, %v150
  %s167 = sld [smem:[#allocation3 + $0x9]]
  %v168 = vstv %s167
  %vm169 = vcmp.le.s32.totalorder %v17, %v168
  %v170 = vsel %vm169, 1, 0
  %v171 = vcvt.s32.f32 %v170
  %v172 = vsel %vm27, %v171, 0.0
  %v173 = vrot.slane %v172, 4
  %v174 = vadd.f32 %v172, %v173
  %v175 = vrot.slane %v174, 2
  %v176 = vadd.f32 %v174, %v175
  %v177 = vrot.slane %v176, 1
  %v178 = vadd.f32 %v176, %v177
  %vm179 = vcmp.eq.s32.totalorder %v20, 9
  %vm180 = vcmp.eq.s32.totalorder %v21, 9
  %v181 = vsel %vm179, %v178, %v165
  %v182 = vsel %vm180, %v178, %v166
  %s183 = sld [smem:[#allocation3 + $0xa]]
  %v184 = vstv %s183
  %vm185 = vcmp.le.s32.totalorder %v17, %v184
  %v186 = vsel %vm185, 1, 0
  %v187 = vcvt.s32.f32 %v186
  %v188 = vsel %vm27, %v187, 0.0
  %v189 = vrot.slane %v188, 4
  %v190 = vadd.f32 %v188, %v189
  %v191 = vrot.slane %v190, 2
  %v192 = vadd.f32 %v190, %v191
  %v193 = vrot.slane %v192, 1
  %v194 = vadd.f32 %v192, %v193
  %vm195 = vcmp.eq.s32.totalorder %v20, 10
  %vm196 = vcmp.eq.s32.totalorder %v21, 10
  %v197 = vsel %vm195, %v194, %v181
  %v198 = vsel %vm196, %v194, %v182
  %s199 = sld [smem:[#allocation3 + $0xb]]
  %v200 = vstv %s199
  %vm201 = vcmp.le.s32.totalorder %v17, %v200
  %v202 = vsel %vm201, 1, 0
  %v203 = vcvt.s32.f32 %v202
  %v204 = vsel %vm27, %v203, 0.0
  %v205 = vrot.slane %v204, 4
  %v206 = vadd.f32 %v204, %v205
  %v207 = vrot.slane %v206, 2
  %v208 = vadd.f32 %v206, %v207
  %v209 = vrot.slane %v208, 1
  %v210 = vadd.f32 %v208, %v209
  %vm211 = vcmp.eq.s32.totalorder %v20, 11
  %vm212 = vcmp.eq.s32.totalorder %v21, 11
  %v213 = vsel %vm211, %v210, %v197
  %v214 = vsel %vm212, %v210, %v198
  %s215 = sld [smem:[#allocation3 + $0xc]]
  %v216 = vstv %s215
  %vm217 = vcmp.le.s32.totalorder %v17, %v216
  %v218 = vsel %vm217, 1, 0
  %v219 = vcvt.s32.f32 %v218
  %v220 = vsel %vm27, %v219, 0.0
  %v221 = vrot.slane %v220, 4
  %v222 = vadd.f32 %v220, %v221
  %v223 = vrot.slane %v222, 2
  %v224 = vadd.f32 %v222, %v223
  %v225 = vrot.slane %v224, 1
  %v226 = vadd.f32 %v224, %v225
  %vm227 = vcmp.eq.s32.totalorder %v20, 12
  %vm228 = vcmp.eq.s32.totalorder %v21, 12
  %v229 = vsel %vm227, %v226, %v213
  %v230 = vsel %vm228, %v226, %v214
  %s231 = sld [smem:[#allocation3 + $0xd]]
  %v232 = vstv %s231
  %vm233 = vcmp.le.s32.totalorder %v17, %v232
  %v234 = vsel %vm233, 1, 0
  %v235 = vcvt.s32.f32 %v234
  %v236 = vsel %vm27, %v235, 0.0
  %v237 = vrot.slane %v236, 4
  %v238 = vadd.f32 %v236, %v237
  %v239 = vrot.slane %v238, 2
  %v240 = vadd.f32 %v238, %v239
  %v241 = vrot.slane %v240, 1
  %v242 = vadd.f32 %v240, %v241
  %vm243 = vcmp.eq.s32.totalorder %v20, 13
  %vm244 = vcmp.eq.s32.totalorder %v21, 13
  %v245 = vsel %vm243, %v242, %v229
  %v246 = vsel %vm244, %v242, %v230
  %s247 = sld [smem:[#allocation3 + $0xe]]
  %v248 = vstv %s247
  %vm249 = vcmp.le.s32.totalorder %v17, %v248
  %v250 = vsel %vm249, 1, 0
  %v251 = vcvt.s32.f32 %v250
  %v252 = vsel %vm27, %v251, 0.0
  %v253 = vrot.slane %v252, 4
  %v254 = vadd.f32 %v252, %v253
  %v255 = vrot.slane %v254, 2
  %v256 = vadd.f32 %v254, %v255
  %v257 = vrot.slane %v256, 1
  %v258 = vadd.f32 %v256, %v257
  %vm259 = vcmp.eq.s32.totalorder %v20, 14
  %vm260 = vcmp.eq.s32.totalorder %v21, 14
  %v261 = vsel %vm259, %v258, %v245
  %v262 = vsel %vm260, %v258, %v246
  %263 = vst [vmem:[%s2] sm:$0xff] %v261
  %264 = vst [vmem:[%s2 + $0x8] sm:$0xff] %v262
  // Predicated region
  $region6: #{body.8} parent=0 // pred_check
    _
  $region7: #{body.8} parent=0 // pred_check_branch
    %266 = sbr.rel (0) target = $region9
  $region8: #{body.8} parent=0 // pred_region
    _
  $region9: #{body.8} parent=0 // pred_fallthru
    _
  // Predicated region
  $region10: #{body.8} parent=0 // pred_check
    _
  $region11: #{body.8} parent=0 // pred_check_branch
    %268 = sbr.rel (0) target = $region13
  $region12: #{body.8} parent=0 // pred_region
    _
  $region13: #{body.8} parent=0 // pred_fallthru
    _

</llo_original>
